<compile_context>
chip_gen: v5e
topology: v5e:2x2
jax: 0.10.0
libtpu: 0.0.40
codegen_flags: <defaults>
</compile_context>

<pallas_src>
import jax
import jax.numpy as jnp
from jax.experimental import pallas as pl
from jax.experimental.pallas import tpu as pltpu


def _gru_recurrence_kernel(gi_ref, whh_ref, bhn_ref, ann_ref, h_scratch):
    """One grid step == Tc timesteps of the GRU recurrence for one batch tile.

    gi_ref:    (TB, Tc, 3H) f32   precomputed x@W_ih^T with folded biases
    whh_ref:   (H, 3H)      bf16  hidden-to-hidden weights (transposed)
    bhn_ref:   (1, H)       f32   b_hn (only bias that must stay in the loop)
    ann_ref:   (TB, Tc, H)  f32   hidden states for this chunk (B,S,H layout)
    h_scratch: (TB, H)      f32   recurrent state carried across time-grid steps
    """
    t = pl.program_id(1)

    # Time index restarts at 0 for every new batch tile -> zero the hidden state.
    @pl.when(t == 0)
    def _():
        h_scratch[...] = jnp.zeros_like(h_scratch)

    tb, tc, three_h = gi_ref.shape
    hdim = three_h // 3

    gi_blk = gi_ref[...]                                   # (TB, Tc, 3H) f32
    whh = whh_ref[...]                                     # (H, 3H) bf16
    bhn = jnp.broadcast_to(bhn_ref[...], (tb, hdim))       # hoisted broadcast

    h = h_scratch[...]                                     # (TB, H) f32
    for i in range(tc):                                    # static unroll over the chunk
        gi = gi_blk[:, i, :]                               # (TB, 3H), static slice
        # The only matmul left on the serial critical path: bf16 MXU, f32 acc.
        gh = jnp.dot(h.astype(whh.dtype), whh,
                     preferred_element_type=jnp.float32)   # (TB, 3H)
        # Gate slices are static multiples of H (lane-aligned when H % 128 == 0).
        r = jax.nn.sigmoid(gi[:, 0:hdim] + gh[:, 0:hdim])
        z = jax.nn.sigmoid(gi[:, hdim:2 * hdim] + gh[:, hdim:2 * hdim])
        n = jnp.tanh(gi[:, 2 * hdim:] + r * (gh[:, 2 * hdim:] + bhn))
        h = (1.0 - z) * n + z * h
        ann_ref[:, i, :] = h.astype(ann_ref.dtype)
    h_scratch[...] = h


def gru_encoder_forward(inputs, embedding, w_ih, w_hh, b_ih, b_hh,
                        *, time_chunk=8, batch_tile=None):
    """inputs: (B, S) int32 token ids.
       embedding: (vocab, H); w_ih/w_hh: (3H, H); b_ih/b_hh: (3H,)
       Returns (annotations (B, S, H), hidden (B, H)) -- matches GRUEncoder.forward."""
    B, S = inputs.shape
    H = embedding.shape[1]

    Tc = time_chunk if (time_chunk <= S and S % time_chunk == 0) else S
    # Block-shape rule: second-to-last block dim must be a multiple of 8 or the full dim.
    assert S % Tc == 0 and (Tc % 8 == 0 or Tc == S)
    TB = B if batch_tile is None else batch_tile
    assert B % TB == 0

    f32, bf16 = jnp.float32, jnp.bfloat16

    # ---------- Parallel part, once in XLA (off the serial critical path) ----------
    encoded = embedding[inputs].astype(f32)                              # (B, S, H)
    # Fold b_ir+b_hr and b_iz+b_hz into the input gates; keep b_in alone for n.
    bias_i = jnp.concatenate([b_ih[:2 * H] + b_hh[:2 * H], b_ih[2 * H:]]).astype(f32)
    # One large MXU-saturating matmul: (B*S, H) @ (H, 3H), bf16 operands, f32 acc.
    gi = (jnp.dot(encoded.reshape(B * S, H).astype(bf16),
                  w_ih.T.astype(bf16),
                  preferred_element_type=f32)
          + bias_i).reshape(B, S, 3 * H)

    whh_t = w_hh.T.astype(bf16)                       # (H, 3H) bf16 for the MXU
    bhn = b_hh[2 * H:].astype(f32).reshape(1, H)      # (1, H)

    # ---------- Sequential recurrence in Pallas ----------
    annotations = pl.pallas_call(
        _gru_recurrence_kernel,
        out_shape=jax.ShapeDtypeStruct((B, S, H), f32),
        grid_spec=pltpu.PrefetchScalarGridSpec(
            num_scalar_prefetch=0,
            grid=(B // TB, S // Tc),
            in_specs=[
                pl.BlockSpec((TB, Tc, 3 * H), lambda b, t: (b, t, 0)),   # gi chunk
                # Constant-index weight block; for large H on v7x consider
                # pipeline_mode=pl.Buffered(1) to skip double-buffering it.
                pl.BlockSpec((H, 3 * H), lambda b, t: (0, 0)),           # W_hh^T (bf16)
                pl.BlockSpec((1, H), lambda b, t: (0, 0)),               # b_hn
            ],
            out_specs=pl.BlockSpec((TB, Tc, H), lambda b, t: (b, t, 0)),  # (B,S,H) layout
            scratch_shapes=[pltpu.VMEM((TB, H), f32)],
        ),
        compiler_params=pltpu.CompilerParams(
            # batch tiles independent (megacore-parallel on v7x); time axis is
            # the recurrence and must run sequentially.
            dimension_semantics=("parallel", "arbitrary"),
            vmem_limit_bytes=48 * 1024 * 1024,
        ),
    )(gi, whh_t, bhn)

    hidden = annotations[:, -1, :]                    # final hidden state, (B, H)
    return annotations, hidden


def _reference_forward(inputs, embedding, w_ih, w_hh, b_ih, b_hh):
    """Pure-JAX f32 reference matching torch.nn.GRUCell semantics."""
    B, S = inputs.shape
    H = embedding.shape[1]
    encoded = embedding[inputs].astype(jnp.float32)
    h = jnp.zeros((B, H), jnp.float32)
    anns = []
    for i in range(S):
        x = encoded[:, i, :]
        gi = x @ w_ih.T + b_ih
        gh = h @ w_hh.T + b_hh
        i_r, i_z, i_n = gi[:, :H], gi[:, H:2 * H], gi[:, 2 * H:]
        h_r, h_z, h_n = gh[:, :H], gh[:, H:2 * H], gh[:, 2 * H:]
        r = jax.nn.sigmoid(i_r + h_r)
        z = jax.nn.sigmoid(i_z + h_z)
        n = jnp.tanh(i_n + r * h_n)
        h = (1.0 - z) * n + z * h
        anns.append(h)
    return jnp.stack(anns, axis=1), h


if __name__ == "__main__":
    # Small, deterministic config (grid = 2 batch tiles x 2 time chunks).
    vocab_size, hidden_size = 20, 32
    batch_size, seq_len = 4, 16

    key = jax.random.PRNGKey(0)
    k_emb, k_wih, k_whh, k_bih, k_bhh, k_tok = jax.random.split(key, 6)

    scale = 1.0 / jnp.sqrt(hidden_size)
    embedding = jax.random.normal(k_emb, (vocab_size, hidden_size), jnp.float32)
    w_ih = jax.random.uniform(k_wih, (3 * hidden_size, hidden_size), jnp.float32,
                              -scale, scale)
    w_hh = jax.random.uniform(k_whh, (3 * hidden_size, hidden_size), jnp.float32,
                              -scale, scale)
    b_ih = jax.random.uniform(k_bih, (3 * hidden_size,), jnp.float32, -scale, scale)
    b_hh = jax.random.uniform(k_bhh, (3 * hidden_size,), jnp.float32, -scale, scale)

    inputs = jax.random.randint(k_tok, (batch_size, seq_len), 0, vocab_size,
                                dtype=jnp.int32)

    annotations, hidden = gru_encoder_forward(
        inputs, embedding, w_ih, w_hh, b_ih, b_hh, time_chunk=8, batch_tile=2)
    jax.block_until_ready((annotations, hidden))

    ref_ann, ref_h = _reference_forward(inputs, embedding, w_ih, w_hh, b_ih, b_hh)
    assert annotations.shape == (batch_size, seq_len, hidden_size)
    assert hidden.shape == (batch_size, hidden_size)
    # bf16 MXU operands (f32 accumulation) -> slightly looser tolerance than pure f32.
    assert jnp.allclose(annotations, ref_ann, atol=3e-2, rtol=3e-2), \
        float(jnp.max(jnp.abs(annotations - ref_ann)))
    assert jnp.allclose(hidden, ref_h, atol=3e-2, rtol=3e-2)

    print("KERNEL_OK")
</pallas_src>

<mosaic_0001>
module attributes {stable_mosaic.version = 11 : i64} {
  func.func @_gru_recurrence_kernel(%arg0: i32, %arg1: i32, %arg2: memref<2x8x96xf32, #tpu.memory_space<vmem>>, %arg3: memref<32x96xbf16, #tpu.memory_space<vmem>>, %arg4: memref<1x32xf32, #tpu.memory_space<vmem>>, %arg5: memref<2x8x32xf32, #tpu.memory_space<vmem>>, %arg6: memref<2x32xf32, #tpu.memory_space<vmem>>) attributes {dimension_semantics = [#tpu.dimension_semantics<parallel>, #tpu.dimension_semantics<arbitrary>], iteration_bounds = array<i64: 2, 2>, scalar_prefetch = 0 : i64, scratch_operands = 1 : i64, tpu.core_type = #tpu.core_type<tc>, window_params = [{transform_indices = @transform_0, window_bounds = array<i64: 2, 8, 96>}, {pipeline_mode = #tpu.pipeline_mode<synchronous>, transform_indices = @transform_1, window_bounds = array<i64: 32, 96>}, {pipeline_mode = #tpu.pipeline_mode<synchronous>, transform_indices = @transform_2, window_bounds = array<i64: 1, 32>}, {transform_indices = @transform_3, window_bounds = array<i64: 2, 8, 32>}]} {
    %c0_i32 = arith.constant 0 : i32
    %0 = arith.cmpi eq, %arg1, %c0_i32 : i32
    %1 = arith.extui %0 : i1 to i32
    %c0_i32_0 = arith.constant 0 : i32
    %2 = arith.cmpi ne, %1, %c0_i32_0 : i32
    scf.if %2 {
      %cst_59 = arith.constant 0.000000e+00 : f32
      %282 = vector.broadcast %cst_59 : f32 to vector<2x32xf32>
      %c0_60 = arith.constant 0 : index
      %c0_61 = arith.constant 0 : index
      %283 = vector.load %arg6[%c0_60, %c0_61] : memref<2x32xf32, #tpu.memory_space<vmem>>, vector<2x32xf32>
      tpu.vector_store %arg6[%c0_60, %c0_61], %282 {strides = array<i32>} : memref<2x32xf32, #tpu.memory_space<vmem>>, vector<2x32xf32>,
    } else {
    }
    %c0 = arith.constant 0 : index
    %c0_1 = arith.constant 0 : index
    %c0_2 = arith.constant 0 : index
    %3 = vector.load %arg2[%c0, %c0_1, %c0_2] : memref<2x8x96xf32, #tpu.memory_space<vmem>>, vector<2x8x96xf32>
    %c0_3 = arith.constant 0 : index
    %c0_4 = arith.constant 0 : index
    %4 = vector.load %arg3[%c0_3, %c0_4] : memref<32x96xbf16, #tpu.memory_space<vmem>>, vector<32x96xbf16>
    %c0_5 = arith.constant 0 : index
    %c0_6 = arith.constant 0 : index
    %5 = vector.load %arg4[%c0_5, %c0_6] : memref<1x32xf32, #tpu.memory_space<vmem>>, vector<1x32xf32>
    %6 = vector.shape_cast %5 : vector<1x32xf32> to vector<1x32xf32>
    %7 = vector.broadcast %6 : vector<1x32xf32> to vector<2x32xf32>
    %c0_7 = arith.constant 0 : index
    %c0_8 = arith.constant 0 : index
    %8 = vector.load %arg6[%c0_7, %c0_8] : memref<2x32xf32, #tpu.memory_space<vmem>>, vector<2x32xf32>
    %9 = vector.extract_strided_slice %3 {offsets = [0, 0, 0], sizes = [2, 1, 96], strides = [1, 1, 1]} : vector<2x8x96xf32> to vector<2x1x96xf32>
    %10 = vector.shape_cast %9 : vector<2x1x96xf32> to vector<2x96xf32>
    %11 = arith.truncf %8 : vector<2x32xf32> to vector<2x32xbf16>
    %cst = arith.constant dense<0.000000e+00> : vector<2x96xf32>
    %12 = tpu.matmul %11, %4, %cst {dimension_numbers = #tpu.dot_dimension_numbers<[1], [0], [0], [1], [0, 0, 1, 1], [], []>} : vector<2x32xbf16>, vector<32x96xbf16>, vector<2x96xf32> -> vector<2x96xf32>
    %13 = vector.extract_strided_slice %10 {offsets = [0, 0], sizes = [2, 32], strides = [1, 1]} : vector<2x96xf32> to vector<2x32xf32>
    %14 = vector.extract_strided_slice %12 {offsets = [0, 0], sizes = [2, 32], strides = [1, 1]} : vector<2x96xf32> to vector<2x32xf32>
    %15 = arith.addf %13, %14 : vector<2x32xf32>
    %16 = arith.negf %15 : vector<2x32xf32>
    %17 = math.exp %16 : vector<2x32xf32>
    %cst_9 = arith.constant 1.000000e+00 : f32
    %18 = vector.broadcast %cst_9 : f32 to vector<2x32xf32>
    %19 = arith.addf %18, %17 : vector<2x32xf32>
    %20 = arith.divf %18, %19 : vector<2x32xf32>
    %21 = vector.extract_strided_slice %10 {offsets = [0, 32], sizes = [2, 32], strides = [1, 1]} : vector<2x96xf32> to vector<2x32xf32>
    %22 = vector.extract_strided_slice %12 {offsets = [0, 32], sizes = [2, 32], strides = [1, 1]} : vector<2x96xf32> to vector<2x32xf32>
    %23 = arith.addf %21, %22 : vector<2x32xf32>
    %24 = arith.negf %23 : vector<2x32xf32>
    %25 = math.exp %24 : vector<2x32xf32>
    %cst_10 = arith.constant 1.000000e+00 : f32
    %26 = vector.broadcast %cst_10 : f32 to vector<2x32xf32>
    %27 = arith.addf %26, %25 : vector<2x32xf32>
    %28 = arith.divf %26, %27 : vector<2x32xf32>
    %29 = vector.extract_strided_slice %10 {offsets = [0, 64], sizes = [2, 32], strides = [1, 1]} : vector<2x96xf32> to vector<2x32xf32>
    %30 = vector.extract_strided_slice %12 {offsets = [0, 64], sizes = [2, 32], strides = [1, 1]} : vector<2x96xf32> to vector<2x32xf32>
    %31 = arith.addf %30, %7 : vector<2x32xf32>
    %32 = arith.mulf %20, %31 : vector<2x32xf32>
    %33 = arith.addf %29, %32 : vector<2x32xf32>
    %34 = math.tanh %33 : vector<2x32xf32>
    %cst_11 = arith.constant 1.000000e+00 : f32
    %35 = vector.broadcast %cst_11 : f32 to vector<2x32xf32>
    %36 = arith.subf %35, %28 : vector<2x32xf32>
    %37 = arith.mulf %36, %34 : vector<2x32xf32>
    %38 = arith.mulf %28, %8 : vector<2x32xf32>
    %39 = arith.addf %37, %38 : vector<2x32xf32>
    %c0_12 = arith.constant 0 : index
    %c0_13 = arith.constant 0 : index
    %c0_14 = arith.constant 0 : index
    %40 = vector.load %arg5[%c0_12, %c0_13, %c0_14] : memref<2x8x32xf32, #tpu.memory_space<vmem>>, vector<2x1x32xf32>
    %41 = vector.shape_cast %40 : vector<2x1x32xf32> to vector<2x32xf32>
    %42 = vector.shape_cast %39 : vector<2x32xf32> to vector<2x1x32xf32>
    tpu.vector_store %arg5[%c0_12, %c0_13, %c0_14], %42 {strides = array<i32>} : memref<2x8x32xf32, #tpu.memory_space<vmem>>, vector<2x1x32xf32>,
    %43 = vector.extract_strided_slice %3 {offsets = [0, 1, 0], sizes = [2, 1, 96], strides = [1, 1, 1]} : vector<2x8x96xf32> to vector<2x1x96xf32>
    %44 = vector.shape_cast %43 : vector<2x1x96xf32> to vector<2x96xf32>
    %45 = arith.truncf %39 : vector<2x32xf32> to vector<2x32xbf16>
    %cst_15 = arith.constant dense<0.000000e+00> : vector<2x96xf32>
    %46 = tpu.matmul %45, %4, %cst_15 {dimension_numbers = #tpu.dot_dimension_numbers<[1], [0], [0], [1], [0, 0, 1, 1], [], []>} : vector<2x32xbf16>, vector<32x96xbf16>, vector<2x96xf32> -> vector<2x96xf32>
    %47 = vector.extract_strided_slice %44 {offsets = [0, 0], sizes = [2, 32], strides = [1, 1]} : vector<2x96xf32> to vector<2x32xf32>
    %48 = vector.extract_strided_slice %46 {offsets = [0, 0], sizes = [2, 32], strides = [1, 1]} : vector<2x96xf32> to vector<2x32xf32>
    %49 = arith.addf %47, %48 : vector<2x32xf32>
    %50 = arith.negf %49 : vector<2x32xf32>
    %51 = math.exp %50 : vector<2x32xf32>
    %cst_16 = arith.constant 1.000000e+00 : f32
    %52 = vector.broadcast %cst_16 : f32 to vector<2x32xf32>
    %53 = arith.addf %52, %51 : vector<2x32xf32>
    %54 = arith.divf %52, %53 : vector<2x32xf32>
    %55 = vector.extract_strided_slice %44 {offsets = [0, 32], sizes = [2, 32], strides = [1, 1]} : vector<2x96xf32> to vector<2x32xf32>
    %56 = vector.extract_strided_slice %46 {offsets = [0, 32], sizes = [2, 32], strides = [1, 1]} : vector<2x96xf32> to vector<2x32xf32>
    %57 = arith.addf %55, %56 : vector<2x32xf32>
    %58 = arith.negf %57 : vector<2x32xf32>
    %59 = math.exp %58 : vector<2x32xf32>
    %cst_17 = arith.constant 1.000000e+00 : f32
    %60 = vector.broadcast %cst_17 : f32 to vector<2x32xf32>
    %61 = arith.addf %60, %59 : vector<2x32xf32>
    %62 = arith.divf %60, %61 : vector<2x32xf32>
    %63 = vector.extract_strided_slice %44 {offsets = [0, 64], sizes = [2, 32], strides = [1, 1]} : vector<2x96xf32> to vector<2x32xf32>
    %64 = vector.extract_strided_slice %46 {offsets = [0, 64], sizes = [2, 32], strides = [1, 1]} : vector<2x96xf32> to vector<2x32xf32>
    %65 = arith.addf %64, %7 : vector<2x32xf32>
    %66 = arith.mulf %54, %65 : vector<2x32xf32>
    %67 = arith.addf %63, %66 : vector<2x32xf32>
    %68 = math.tanh %67 : vector<2x32xf32>
    %cst_18 = arith.constant 1.000000e+00 : f32
    %69 = vector.broadcast %cst_18 : f32 to vector<2x32xf32>
    %70 = arith.subf %69, %62 : vector<2x32xf32>
    %71 = arith.mulf %70, %68 : vector<2x32xf32>
    %72 = arith.mulf %62, %39 : vector<2x32xf32>
    %73 = arith.addf %71, %72 : vector<2x32xf32>
    %c0_19 = arith.constant 0 : index
    %c1 = arith.constant 1 : index
    %c0_20 = arith.constant 0 : index
    %74 = vector.load %arg5[%c0_19, %c1, %c0_20] : memref<2x8x32xf32, #tpu.memory_space<vmem>>, vector<2x1x32xf32>
    %75 = vector.shape_cast %74 : vector<2x1x32xf32> to vector<2x32xf32>
    %76 = vector.shape_cast %73 : vector<2x32xf32> to vector<2x1x32xf32>
    tpu.vector_store %arg5[%c0_19, %c1, %c0_20], %76 {strides = array<i32>} : memref<2x8x32xf32, #tpu.memory_space<vmem>>, vector<2x1x32xf32>,
    %77 = vector.extract_strided_slice %3 {offsets = [0, 2, 0], sizes = [2, 1, 96], strides = [1, 1, 1]} : vector<2x8x96xf32> to vector<2x1x96xf32>
    %78 = vector.shape_cast %77 : vector<2x1x96xf32> to vector<2x96xf32>
    %79 = arith.truncf %73 : vector<2x32xf32> to vector<2x32xbf16>
    %cst_21 = arith.constant dense<0.000000e+00> : vector<2x96xf32>
    %80 = tpu.matmul %79, %4, %cst_21 {dimension_numbers = #tpu.dot_dimension_numbers<[1], [0], [0], [1], [0, 0, 1, 1], [], []>} : vector<2x32xbf16>, vector<32x96xbf16>, vector<2x96xf32> -> vector<2x96xf32>
    %81 = vector.extract_strided_slice %78 {offsets = [0, 0], sizes = [2, 32], strides = [1, 1]} : vector<2x96xf32> to vector<2x32xf32>
    %82 = vector.extract_strided_slice %80 {offsets = [0, 0], sizes = [2, 32], strides = [1, 1]} : vector<2x96xf32> to vector<2x32xf32>
    %83 = arith.addf %81, %82 : vector<2x32xf32>
    %84 = arith.negf %83 : vector<2x32xf32>
    %85 = math.exp %84 : vector<2x32xf32>
    %cst_22 = arith.constant 1.000000e+00 : f32
    %86 = vector.broadcast %cst_22 : f32 to vector<2x32xf32>
    %87 = arith.addf %86, %85 : vector<2x32xf32>
    %88 = arith.divf %86, %87 : vector<2x32xf32>
    %89 = vector.extract_strided_slice %78 {offsets = [0, 32], sizes = [2, 32], strides = [1, 1]} : vector<2x96xf32> to vector<2x32xf32>
    %90 = vector.extract_strided_slice %80 {offsets = [0, 32], sizes = [2, 32], strides = [1, 1]} : vector<2x96xf32> to vector<2x32xf32>
    %91 = arith.addf %89, %90 : vector<2x32xf32>
    %92 = arith.negf %91 : vector<2x32xf32>
    %93 = math.exp %92 : vector<2x32xf32>
    %cst_23 = arith.constant 1.000000e+00 : f32
    %94 = vector.broadcast %cst_23 : f32 to vector<2x32xf32>
    %95 = arith.addf %94, %93 : vector<2x32xf32>
    %96 = arith.divf %94, %95 : vector<2x32xf32>
    %97 = vector.extract_strided_slice %78 {offsets = [0, 64], sizes = [2, 32], strides = [1, 1]} : vector<2x96xf32> to vector<2x32xf32>
    %98 = vector.extract_strided_slice %80 {offsets = [0, 64], sizes = [2, 32], strides = [1, 1]} : vector<2x96xf32> to vector<2x32xf32>
    %99 = arith.addf %98, %7 : vector<2x32xf32>
    %100 = arith.mulf %88, %99 : vector<2x32xf32>
    %101 = arith.addf %97, %100 : vector<2x32xf32>
    %102 = math.tanh %101 : vector<2x32xf32>
    %cst_24 = arith.constant 1.000000e+00 : f32
    %103 = vector.broadcast %cst_24 : f32 to vector<2x32xf32>
    %104 = arith.subf %103, %96 : vector<2x32xf32>
    %105 = arith.mulf %104, %102 : vector<2x32xf32>
    %106 = arith.mulf %96, %73 : vector<2x32xf32>
    %107 = arith.addf %105, %106 : vector<2x32xf32>
    %c0_25 = arith.constant 0 : index
    %c2 = arith.constant 2 : index
    %c0_26 = arith.constant 0 : index
    %108 = vector.load %arg5[%c0_25, %c2, %c0_26] : memref<2x8x32xf32, #tpu.memory_space<vmem>>, vector<2x1x32xf32>
    %109 = vector.shape_cast %108 : vector<2x1x32xf32> to vector<2x32xf32>
    %110 = vector.shape_cast %107 : vector<2x32xf32> to vector<2x1x32xf32>
    tpu.vector_store %arg5[%c0_25, %c2, %c0_26], %110 {strides = array<i32>} : memref<2x8x32xf32, #tpu.memory_space<vmem>>, vector<2x1x32xf32>,
    %111 = vector.extract_strided_slice %3 {offsets = [0, 3, 0], sizes = [2, 1, 96], strides = [1, 1, 1]} : vector<2x8x96xf32> to vector<2x1x96xf32>
    %112 = vector.shape_cast %111 : vector<2x1x96xf32> to vector<2x96xf32>
    %113 = arith.truncf %107 : vector<2x32xf32> to vector<2x32xbf16>
    %cst_27 = arith.constant dense<0.000000e+00> : vector<2x96xf32>
    %114 = tpu.matmul %113, %4, %cst_27 {dimension_numbers = #tpu.dot_dimension_numbers<[1], [0], [0], [1], [0, 0, 1, 1], [], []>} : vector<2x32xbf16>, vector<32x96xbf16>, vector<2x96xf32> -> vector<2x96xf32>
    %115 = vector.extract_strided_slice %112 {offsets = [0, 0], sizes = [2, 32], strides = [1, 1]} : vector<2x96xf32> to vector<2x32xf32>
    %116 = vector.extract_strided_slice %114 {offsets = [0, 0], sizes = [2, 32], strides = [1, 1]} : vector<2x96xf32> to vector<2x32xf32>
    %117 = arith.addf %115, %116 : vector<2x32xf32>
    %118 = arith.negf %117 : vector<2x32xf32>
    %119 = math.exp %118 : vector<2x32xf32>
    %cst_28 = arith.constant 1.000000e+00 : f32
    %120 = vector.broadcast %cst_28 : f32 to vector<2x32xf32>
    %121 = arith.addf %120, %119 : vector<2x32xf32>
    %122 = arith.divf %120, %121 : vector<2x32xf32>
    %123 = vector.extract_strided_slice %112 {offsets = [0, 32], sizes = [2, 32], strides = [1, 1]} : vector<2x96xf32> to vector<2x32xf32>
    %124 = vector.extract_strided_slice %114 {offsets = [0, 32], sizes = [2, 32], strides = [1, 1]} : vector<2x96xf32> to vector<2x32xf32>
    %125 = arith.addf %123, %124 : vector<2x32xf32>
    %126 = arith.negf %125 : vector<2x32xf32>
    %127 = math.exp %126 : vector<2x32xf32>
    %cst_29 = arith.constant 1.000000e+00 : f32
    %128 = vector.broadcast %cst_29 : f32 to vector<2x32xf32>
    %129 = arith.addf %128, %127 : vector<2x32xf32>
    %130 = arith.divf %128, %129 : vector<2x32xf32>
    %131 = vector.extract_strided_slice %112 {offsets = [0, 64], sizes = [2, 32], strides = [1, 1]} : vector<2x96xf32> to vector<2x32xf32>
    %132 = vector.extract_strided_slice %114 {offsets = [0, 64], sizes = [2, 32], strides = [1, 1]} : vector<2x96xf32> to vector<2x32xf32>
    %133 = arith.addf %132, %7 : vector<2x32xf32>
    %134 = arith.mulf %122, %133 : vector<2x32xf32>
    %135 = arith.addf %131, %134 : vector<2x32xf32>
    %136 = math.tanh %135 : vector<2x32xf32>
    %cst_30 = arith.constant 1.000000e+00 : f32
    %137 = vector.broadcast %cst_30 : f32 to vector<2x32xf32>
    %138 = arith.subf %137, %130 : vector<2x32xf32>
    %139 = arith.mulf %138, %136 : vector<2x32xf32>
    %140 = arith.mulf %130, %107 : vector<2x32xf32>
    %141 = arith.addf %139, %140 : vector<2x32xf32>
    %c0_31 = arith.constant 0 : index
    %c3 = arith.constant 3 : index
    %c0_32 = arith.constant 0 : index
    %142 = vector.load %arg5[%c0_31, %c3, %c0_32] : memref<2x8x32xf32, #tpu.memory_space<vmem>>, vector<2x1x32xf32>
    %143 = vector.shape_cast %142 : vector<2x1x32xf32> to vector<2x32xf32>
    %144 = vector.shape_cast %141 : vector<2x32xf32> to vector<2x1x32xf32>
    tpu.vector_store %arg5[%c0_31, %c3, %c0_32], %144 {strides = array<i32>} : memref<2x8x32xf32, #tpu.memory_space<vmem>>, vector<2x1x32xf32>,
    %145 = vector.extract_strided_slice %3 {offsets = [0, 4, 0], sizes = [2, 1, 96], strides = [1, 1, 1]} : vector<2x8x96xf32> to vector<2x1x96xf32>
    %146 = vector.shape_cast %145 : vector<2x1x96xf32> to vector<2x96xf32>
    %147 = arith.truncf %141 : vector<2x32xf32> to vector<2x32xbf16>
    %cst_33 = arith.constant dense<0.000000e+00> : vector<2x96xf32>
    %148 = tpu.matmul %147, %4, %cst_33 {dimension_numbers = #tpu.dot_dimension_numbers<[1], [0], [0], [1], [0, 0, 1, 1], [], []>} : vector<2x32xbf16>, vector<32x96xbf16>, vector<2x96xf32> -> vector<2x96xf32>
    %149 = vector.extract_strided_slice %146 {offsets = [0, 0], sizes = [2, 32], strides = [1, 1]} : vector<2x96xf32> to vector<2x32xf32>
    %150 = vector.extract_strided_slice %148 {offsets = [0, 0], sizes = [2, 32], strides = [1, 1]} : vector<2x96xf32> to vector<2x32xf32>
    %151 = arith.addf %149, %150 : vector<2x32xf32>
    %152 = arith.negf %151 : vector<2x32xf32>
    %153 = math.exp %152 : vector<2x32xf32>
    %cst_34 = arith.constant 1.000000e+00 : f32
    %154 = vector.broadcast %cst_34 : f32 to vector<2x32xf32>
    %155 = arith.addf %154, %153 : vector<2x32xf32>
    %156 = arith.divf %154, %155 : vector<2x32xf32>
    %157 = vector.extract_strided_slice %146 {offsets = [0, 32], sizes = [2, 32], strides = [1, 1]} : vector<2x96xf32> to vector<2x32xf32>
    %158 = vector.extract_strided_slice %148 {offsets = [0, 32], sizes = [2, 32], strides = [1, 1]} : vector<2x96xf32> to vector<2x32xf32>
    %159 = arith.addf %157, %158 : vector<2x32xf32>
    %160 = arith.negf %159 : vector<2x32xf32>
    %161 = math.exp %160 : vector<2x32xf32>
    %cst_35 = arith.constant 1.000000e+00 : f32
    %162 = vector.broadcast %cst_35 : f32 to vector<2x32xf32>
    %163 = arith.addf %162, %161 : vector<2x32xf32>
    %164 = arith.divf %162, %163 : vector<2x32xf32>
    %165 = vector.extract_strided_slice %146 {offsets = [0, 64], sizes = [2, 32], strides = [1, 1]} : vector<2x96xf32> to vector<2x32xf32>
    %166 = vector.extract_strided_slice %148 {offsets = [0, 64], sizes = [2, 32], strides = [1, 1]} : vector<2x96xf32> to vector<2x32xf32>
    %167 = arith.addf %166, %7 : vector<2x32xf32>
    %168 = arith.mulf %156, %167 : vector<2x32xf32>
    %169 = arith.addf %165, %168 : vector<2x32xf32>
    %170 = math.tanh %169 : vector<2x32xf32>
    %cst_36 = arith.constant 1.000000e+00 : f32
    %171 = vector.broadcast %cst_36 : f32 to vector<2x32xf32>
    %172 = arith.subf %171, %164 : vector<2x32xf32>
    %173 = arith.mulf %172, %170 : vector<2x32xf32>
    %174 = arith.mulf %164, %141 : vector<2x32xf32>
    %175 = arith.addf %173, %174 : vector<2x32xf32>
    %c0_37 = arith.constant 0 : index
    %c4 = arith.constant 4 : index
    %c0_38 = arith.constant 0 : index
    %176 = vector.load %arg5[%c0_37, %c4, %c0_38] : memref<2x8x32xf32, #tpu.memory_space<vmem>>, vector<2x1x32xf32>
    %177 = vector.shape_cast %176 : vector<2x1x32xf32> to vector<2x32xf32>
    %178 = vector.shape_cast %175 : vector<2x32xf32> to vector<2x1x32xf32>
    tpu.vector_store %arg5[%c0_37, %c4, %c0_38], %178 {strides = array<i32>} : memref<2x8x32xf32, #tpu.memory_space<vmem>>, vector<2x1x32xf32>,
    %179 = vector.extract_strided_slice %3 {offsets = [0, 5, 0], sizes = [2, 1, 96], strides = [1, 1, 1]} : vector<2x8x96xf32> to vector<2x1x96xf32>
    %180 = vector.shape_cast %179 : vector<2x1x96xf32> to vector<2x96xf32>
    %181 = arith.truncf %175 : vector<2x32xf32> to vector<2x32xbf16>
    %cst_39 = arith.constant dense<0.000000e+00> : vector<2x96xf32>
    %182 = tpu.matmul %181, %4, %cst_39 {dimension_numbers = #tpu.dot_dimension_numbers<[1], [0], [0], [1], [0, 0, 1, 1], [], []>} : vector<2x32xbf16>, vector<32x96xbf16>, vector<2x96xf32> -> vector<2x96xf32>
    %183 = vector.extract_strided_slice %180 {offsets = [0, 0], sizes = [2, 32], strides = [1, 1]} : vector<2x96xf32> to vector<2x32xf32>
    %184 = vector.extract_strided_slice %182 {offsets = [0, 0], sizes = [2, 32], strides = [1, 1]} : vector<2x96xf32> to vector<2x32xf32>
    %185 = arith.addf %183, %184 : vector<2x32xf32>
    %186 = arith.negf %185 : vector<2x32xf32>
    %187 = math.exp %186 : vector<2x32xf32>
    %cst_40 = arith.constant 1.000000e+00 : f32
    %188 = vector.broadcast %cst_40 : f32 to vector<2x32xf32>
    %189 = arith.addf %188, %187 : vector<2x32xf32>
    %190 = arith.divf %188, %189 : vector<2x32xf32>
    %191 = vector.extract_strided_slice %180 {offsets = [0, 32], sizes = [2, 32], strides = [1, 1]} : vector<2x96xf32> to vector<2x32xf32>
    %192 = vector.extract_strided_slice %182 {offsets = [0, 32], sizes = [2, 32], strides = [1, 1]} : vector<2x96xf32> to vector<2x32xf32>
    %193 = arith.addf %191, %192 : vector<2x32xf32>
    %194 = arith.negf %193 : vector<2x32xf32>
    %195 = math.exp %194 : vector<2x32xf32>
    %cst_41 = arith.constant 1.000000e+00 : f32
    %196 = vector.broadcast %cst_41 : f32 to vector<2x32xf32>
    %197 = arith.addf %196, %195 : vector<2x32xf32>
    %198 = arith.divf %196, %197 : vector<2x32xf32>
    %199 = vector.extract_strided_slice %180 {offsets = [0, 64], sizes = [2, 32], strides = [1, 1]} : vector<2x96xf32> to vector<2x32xf32>
    %200 = vector.extract_strided_slice %182 {offsets = [0, 64], sizes = [2, 32], strides = [1, 1]} : vector<2x96xf32> to vector<2x32xf32>
    %201 = arith.addf %200, %7 : vector<2x32xf32>
    %202 = arith.mulf %190, %201 : vector<2x32xf32>
    %203 = arith.addf %199, %202 : vector<2x32xf32>
    %204 = math.tanh %203 : vector<2x32xf32>
    %cst_42 = arith.constant 1.000000e+00 : f32
    %205 = vector.broadcast %cst_42 : f32 to vector<2x32xf32>
    %206 = arith.subf %205, %198 : vector<2x32xf32>
    %207 = arith.mulf %206, %204 : vector<2x32xf32>
    %208 = arith.mulf %198, %175 : vector<2x32xf32>
    %209 = arith.addf %207, %208 : vector<2x32xf32>
    %c0_43 = arith.constant 0 : index
    %c5 = arith.constant 5 : index
    %c0_44 = arith.constant 0 : index
    %210 = vector.load %arg5[%c0_43, %c5, %c0_44] : memref<2x8x32xf32, #tpu.memory_space<vmem>>, vector<2x1x32xf32>
    %211 = vector.shape_cast %210 : vector<2x1x32xf32> to vector<2x32xf32>
    %212 = vector.shape_cast %209 : vector<2x32xf32> to vector<2x1x32xf32>
    tpu.vector_store %arg5[%c0_43, %c5, %c0_44], %212 {strides = array<i32>} : memref<2x8x32xf32, #tpu.memory_space<vmem>>, vector<2x1x32xf32>,
    %213 = vector.extract_strided_slice %3 {offsets = [0, 6, 0], sizes = [2, 1, 96], strides = [1, 1, 1]} : vector<2x8x96xf32> to vector<2x1x96xf32>
    %214 = vector.shape_cast %213 : vector<2x1x96xf32> to vector<2x96xf32>
    %215 = arith.truncf %209 : vector<2x32xf32> to vector<2x32xbf16>
    %cst_45 = arith.constant dense<0.000000e+00> : vector<2x96xf32>
    %216 = tpu.matmul %215, %4, %cst_45 {dimension_numbers = #tpu.dot_dimension_numbers<[1], [0], [0], [1], [0, 0, 1, 1], [], []>} : vector<2x32xbf16>, vector<32x96xbf16>, vector<2x96xf32> -> vector<2x96xf32>
    %217 = vector.extract_strided_slice %214 {offsets = [0, 0], sizes = [2, 32], strides = [1, 1]} : vector<2x96xf32> to vector<2x32xf32>
    %218 = vector.extract_strided_slice %216 {offsets = [0, 0], sizes = [2, 32], strides = [1, 1]} : vector<2x96xf32> to vector<2x32xf32>
    %219 = arith.addf %217, %218 : vector<2x32xf32>
    %220 = arith.negf %219 : vector<2x32xf32>
    %221 = math.exp %220 : vector<2x32xf32>
    %cst_46 = arith.constant 1.000000e+00 : f32
    %222 = vector.broadcast %cst_46 : f32 to vector<2x32xf32>
    %223 = arith.addf %222, %221 : vector<2x32xf32>
    %224 = arith.divf %222, %223 : vector<2x32xf32>
    %225 = vector.extract_strided_slice %214 {offsets = [0, 32], sizes = [2, 32], strides = [1, 1]} : vector<2x96xf32> to vector<2x32xf32>
    %226 = vector.extract_strided_slice %216 {offsets = [0, 32], sizes = [2, 32], strides = [1, 1]} : vector<2x96xf32> to vector<2x32xf32>
    %227 = arith.addf %225, %226 : vector<2x32xf32>
    %228 = arith.negf %227 : vector<2x32xf32>
    %229 = math.exp %228 : vector<2x32xf32>
    %cst_47 = arith.constant 1.000000e+00 : f32
    %230 = vector.broadcast %cst_47 : f32 to vector<2x32xf32>
    %231 = arith.addf %230, %229 : vector<2x32xf32>
    %232 = arith.divf %230, %231 : vector<2x32xf32>
    %233 = vector.extract_strided_slice %214 {offsets = [0, 64], sizes = [2, 32], strides = [1, 1]} : vector<2x96xf32> to vector<2x32xf32>
    %234 = vector.extract_strided_slice %216 {offsets = [0, 64], sizes = [2, 32], strides = [1, 1]} : vector<2x96xf32> to vector<2x32xf32>
    %235 = arith.addf %234, %7 : vector<2x32xf32>
    %236 = arith.mulf %224, %235 : vector<2x32xf32>
    %237 = arith.addf %233, %236 : vector<2x32xf32>
    %238 = math.tanh %237 : vector<2x32xf32>
    %cst_48 = arith.constant 1.000000e+00 : f32
    %239 = vector.broadcast %cst_48 : f32 to vector<2x32xf32>
    %240 = arith.subf %239, %232 : vector<2x32xf32>
    %241 = arith.mulf %240, %238 : vector<2x32xf32>
    %242 = arith.mulf %232, %209 : vector<2x32xf32>
    %243 = arith.addf %241, %242 : vector<2x32xf32>
    %c0_49 = arith.constant 0 : index
    %c6 = arith.constant 6 : index
    %c0_50 = arith.constant 0 : index
    %244 = vector.load %arg5[%c0_49, %c6, %c0_50] : memref<2x8x32xf32, #tpu.memory_space<vmem>>, vector<2x1x32xf32>
    %245 = vector.shape_cast %244 : vector<2x1x32xf32> to vector<2x32xf32>
    %246 = vector.shape_cast %243 : vector<2x32xf32> to vector<2x1x32xf32>
    tpu.vector_store %arg5[%c0_49, %c6, %c0_50], %246 {strides = array<i32>} : memref<2x8x32xf32, #tpu.memory_space<vmem>>, vector<2x1x32xf32>,
    %247 = vector.extract_strided_slice %3 {offsets = [0, 7, 0], sizes = [2, 1, 96], strides = [1, 1, 1]} : vector<2x8x96xf32> to vector<2x1x96xf32>
    %248 = vector.shape_cast %247 : vector<2x1x96xf32> to vector<2x96xf32>
    %249 = arith.truncf %243 : vector<2x32xf32> to vector<2x32xbf16>
    %cst_51 = arith.constant dense<0.000000e+00> : vector<2x96xf32>
    %250 = tpu.matmul %249, %4, %cst_51 {dimension_numbers = #tpu.dot_dimension_numbers<[1], [0], [0], [1], [0, 0, 1, 1], [], []>} : vector<2x32xbf16>, vector<32x96xbf16>, vector<2x96xf32> -> vector<2x96xf32>
    %251 = vector.extract_strided_slice %248 {offsets = [0, 0], sizes = [2, 32], strides = [1, 1]} : vector<2x96xf32> to vector<2x32xf32>
    %252 = vector.extract_strided_slice %250 {offsets = [0, 0], sizes = [2, 32], strides = [1, 1]} : vector<2x96xf32> to vector<2x32xf32>
    %253 = arith.addf %251, %252 : vector<2x32xf32>
    %254 = arith.negf %253 : vector<2x32xf32>
    %255 = math.exp %254 : vector<2x32xf32>
    %cst_52 = arith.constant 1.000000e+00 : f32
    %256 = vector.broadcast %cst_52 : f32 to vector<2x32xf32>
    %257 = arith.addf %256, %255 : vector<2x32xf32>
    %258 = arith.divf %256, %257 : vector<2x32xf32>
    %259 = vector.extract_strided_slice %248 {offsets = [0, 32], sizes = [2, 32], strides = [1, 1]} : vector<2x96xf32> to vector<2x32xf32>
    %260 = vector.extract_strided_slice %250 {offsets = [0, 32], sizes = [2, 32], strides = [1, 1]} : vector<2x96xf32> to vector<2x32xf32>
    %261 = arith.addf %259, %260 : vector<2x32xf32>
    %262 = arith.negf %261 : vector<2x32xf32>
    %263 = math.exp %262 : vector<2x32xf32>
    %cst_53 = arith.constant 1.000000e+00 : f32
    %264 = vector.broadcast %cst_53 : f32 to vector<2x32xf32>
    %265 = arith.addf %264, %263 : vector<2x32xf32>
    %266 = arith.divf %264, %265 : vector<2x32xf32>
    %267 = vector.extract_strided_slice %248 {offsets = [0, 64], sizes = [2, 32], strides = [1, 1]} : vector<2x96xf32> to vector<2x32xf32>
    %268 = vector.extract_strided_slice %250 {offsets = [0, 64], sizes = [2, 32], strides = [1, 1]} : vector<2x96xf32> to vector<2x32xf32>
    %269 = arith.addf %268, %7 : vector<2x32xf32>
    %270 = arith.mulf %258, %269 : vector<2x32xf32>
    %271 = arith.addf %267, %270 : vector<2x32xf32>
    %272 = math.tanh %271 : vector<2x32xf32>
    %cst_54 = arith.constant 1.000000e+00 : f32
    %273 = vector.broadcast %cst_54 : f32 to vector<2x32xf32>
    %274 = arith.subf %273, %266 : vector<2x32xf32>
    %275 = arith.mulf %274, %272 : vector<2x32xf32>
    %276 = arith.mulf %266, %243 : vector<2x32xf32>
    %277 = arith.addf %275, %276 : vector<2x32xf32>
    %c0_55 = arith.constant 0 : index
    %c7 = arith.constant 7 : index
    %c0_56 = arith.constant 0 : index
    %278 = vector.load %arg5[%c0_55, %c7, %c0_56] : memref<2x8x32xf32, #tpu.memory_space<vmem>>, vector<2x1x32xf32>
    %279 = vector.shape_cast %278 : vector<2x1x32xf32> to vector<2x32xf32>
    %280 = vector.shape_cast %277 : vector<2x32xf32> to vector<2x1x32xf32>
    tpu.vector_store %arg5[%c0_55, %c7, %c0_56], %280 {strides = array<i32>} : memref<2x8x32xf32, #tpu.memory_space<vmem>>, vector<2x1x32xf32>,
    %c0_57 = arith.constant 0 : index
    %c0_58 = arith.constant 0 : index
    %281 = vector.load %arg6[%c0_57, %c0_58] : memref<2x32xf32, #tpu.memory_space<vmem>>, vector<2x32xf32>
    tpu.vector_store %arg6[%c0_57, %c0_58], %277 {strides = array<i32>} : memref<2x32xf32, #tpu.memory_space<vmem>>, vector<2x32xf32>,
    return
  }
  func.func @transform_0(%arg0: i32, %arg1: i32) -> (i32, i32, i32) {
    %c0_i32 = arith.constant 0 : i32
    %c0_i32_0 = arith.constant 0 : i32
    return %arg0, %arg1, %c0_i32 : i32, i32, i32
  }
  func.func @transform_1(%arg0: i32, %arg1: i32) -> (i32, i32) {
    %c0_i32 = arith.constant 0 : i32
    %c0_i32_0 = arith.constant 0 : i32
    %c0_i32_1 = arith.constant 0 : i32
    return %c0_i32, %c0_i32_0 : i32, i32
  }
  func.func @transform_2(%arg0: i32, %arg1: i32) -> (i32, i32) {
    %c0_i32 = arith.constant 0 : i32
    %c0_i32_0 = arith.constant 0 : i32
    %c0_i32_1 = arith.constant 0 : i32
    return %c0_i32, %c0_i32_0 : i32, i32
  }
  func.func @transform_3(%arg0: i32, %arg1: i32) -> (i32, i32, i32) {
    %c0_i32 = arith.constant 0 : i32
    %c0_i32_0 = arith.constant 0 : i32
    return %arg0, %arg1, %c0_i32 : i32, i32, i32
  }
}

</mosaic_0001>

<llo_original>
// kernel: tpu_custom_call.1
$region0: #{tpu_custom_call.1}
  #allocation0 [shape = 'u32[]', space=smem, size = 0x4, offset = 0x4, fixed_abs, tag = 'smem constant byte address 0x4 - core index']
  #allocation1 [shape = 'u32[72,128]{1,0:T(1,128)}', space=vmem, size = 0x9000, scoped, tag = 'internal scratch']
  #allocation2 [shape = 'f32[2,32]{1,0:T(2,128)}', space=vmem, size = 0x400, scoped, tag = 'scratch operand']
  %s0 = inlined_call_operand.hbm [shape: f32[4,16,96], index: 0, kind: input, shape index: {}]
  %s1 = inlined_call_operand.hbm [shape: bf16[32,96], index: 1, kind: input, shape index: {}]
  %s2 = inlined_call_operand.vmem [shape: f32[1,32], index: 2, kind: input, shape index: {}]
  %s3 = inlined_call_operand.hbm [shape: f32[4,16,32], index: 3, kind: output, shape index: {}]
  %s4 = sld [smem:[#allocation0]]
  $region57: #{tpu_custom_call.1} parent=0
    _
  %s6 = ssub.s32 1, %s4
  %s7 = scalar_select 0, %s6, %s4
  $region1: #{tpu_custom_call.1} parent=0
    #allocation3 [shape = 'u8[16384]{0}', space=vmem, size = 0x4000, scoped, tag = 'input window, operand 0']
    #allocation4 [shape = 's32[2]{0}', space=sflag, size = 0x8, scoped, tag = 'scoped memory for tpu_custom_call.1']
    #allocation5 [shape = 's32[2]{0}', space=sflag, size = 0x8, scoped, tag = 'scoped memory for tpu_custom_call.1']
    #allocation6 [shape = 'u8[8192]{0}', space=vmem, size = 0x2000, scoped, tag = 'input window, operand 1, single buffered']
    #allocation7 [shape = 's32[1]{0}', space=sflag, size = 0x4, scoped, tag = 'scoped memory for tpu_custom_call.1']
    #allocation8 [shape = 'u8[16384]{0}', space=vmem, size = 0x4000, scoped, tag = 'output window, operand 0']
    %8 = vsyncpa [#allocation4], 0
    %s9 = scalar_lea.sflag [#allocation4], 1
    %10 = vsyncpa %s9, 0
    %11 = vsyncpa [#allocation7], 0
    %12 = vsyncpa [#allocation5], 0
    %s13 = scalar_lea.sflag [#allocation5], 1
    %14 = vsyncpa %s13, 0
    loop: start=0, step=1, limit=6
    $region2: #{tpu_custom_call.1} parent=1 // loop_pre_header
      _
    $region3: #{tpu_custom_call.1} parent=1 // loop_header
      %s16 = sphi 0, %s20
      %p17 = scmp.ge.s32.totalorder %s16, 6
      %s23 = sphi 0, %s35
      %s24 = sphi 0, %s31
      %s25 = sphi 0, %s23
      %s26 = sphi 0, %s24
      %s27 = sphi 0, %s25
      %s28 = sphi 0, %s26
      %s40 = sphi 0, %s42
      %s43 = sphi 0, %s40
      %s44 = sphi 0, %s43
      %s60 = sphi 0, %s44
      %s64 = sphi 0, %s64
      %s66 = sphi 0, %s64
      %s67 = sphi 0, %s66
      %s81 = sphi 0, %s67
      %s85 = sphi 0, %s85
      %s87 = sphi 0, %s85
      %s88 = sphi 0, %s87
      %s102 = sphi 0, %s88
      %s110 = sphi 0, %s112
      %s113 = sphi 0, %s110
      %s114 = sphi 0, %s113
      %s130 = sphi 0, %s114
    $region4: #{tpu_custom_call.1} parent=1 // loop_header_branch
      %19 = sbr.rel (%p17) target = $region8
    $region5: #{tpu_custom_call.1} parent=1 // loop_body
      %s21 = ssub.s32 %s16, 1
      %s22 = ssub.s32 %s16, 2
      %s29 = sadd.s32 1, %s24
      %p30 = scmp.ge.s32.totalorder %s29, 2
      %s31 = scalar_select %p30, 0, %s29
      %s32 = sadd.s32 1, %s23
      %s33 = scalar_select %p30, %s32, %s23
      %p34 = scmp.ge.s32.totalorder %s33, 2
      %s35 = scalar_select %p34, 0, %s33
      %s36 = ssub.s32 %s23, %s35
      %s37 = ssub.s32 %s24, %s31
      %s38 = sor.u32 %s36, %s37
      %p39 = scmp.eq.s32.totalorder %s38, 0
      %s41 = sadd.s32 %s40, 1
      %s42 = scalar_select %p39, %s40, %s41
      %p45 = pneg %p39
      %p46 = scmp.eq.s32.totalorder %s16, 3
      %p47 = por %p45, %p46
      %p48 = scmp.ne.s32.totalorder %s40, %s43
      %p49 = scmp.eq.s32.totalorder %s16, 0
      %p50 = por %p48, %p49
      %p51 = scmp.ne.s32.totalorder %s40, %s43
      %p52 = scmp.eq.s32.totalorder %s21, 3
      %p53 = por %p51, %p52
      %p54 = scmp.ne.s32.totalorder %s43, %s44
      %p55 = scmp.eq.s32.totalorder %s21, 0
      %p56 = por %p54, %p55
      %p57 = scmp.ne.s32.totalorder %s43, %s44
      %p58 = scmp.eq.s32.totalorder %s22, 3
      %p59 = por %p57, %p58
      %p61 = scmp.ne.s32.totalorder %s44, %s60
      %p62 = scmp.eq.s32.totalorder %s22, 0
      %p63 = por %p61, %p62
      %s65 = sadd.s32 %s64, 1
      %p68 = scmp.eq.s32.totalorder %s16, 3
      %p69 = scmp.ne.s32.totalorder %s64, %s66
      %p70 = scmp.eq.s32.totalorder %s16, 0
      %p71 = por %p69, %p70
      %p72 = scmp.ne.s32.totalorder %s64, %s66
      %p73 = scmp.eq.s32.totalorder %s21, 3
      %p74 = por %p72, %p73
      %p75 = scmp.ne.s32.totalorder %s66, %s67
      %p76 = scmp.eq.s32.totalorder %s21, 0
      %p77 = por %p75, %p76
      %p78 = scmp.ne.s32.totalorder %s66, %s67
      %p79 = scmp.eq.s32.totalorder %s22, 3
      %p80 = por %p78, %p79
      %p82 = scmp.ne.s32.totalorder %s67, %s81
      %p83 = scmp.eq.s32.totalorder %s22, 0
      %p84 = por %p82, %p83
      %s86 = sadd.s32 %s85, 1
      %p89 = scmp.eq.s32.totalorder %s16, 3
      %p90 = scmp.ne.s32.totalorder %s85, %s87
      %p91 = scmp.eq.s32.totalorder %s16, 0
      %p92 = por %p90, %p91
      %p93 = scmp.ne.s32.totalorder %s85, %s87
      %p94 = scmp.eq.s32.totalorder %s21, 3
      %p95 = por %p93, %p94
      %p96 = scmp.ne.s32.totalorder %s87, %s88
      %p97 = scmp.eq.s32.totalorder %s21, 0
      %p98 = por %p96, %p97
      %p99 = scmp.ne.s32.totalorder %s87, %s88
      %p100 = scmp.eq.s32.totalorder %s22, 3
      %p101 = por %p99, %p100
      %p103 = scmp.ne.s32.totalorder %s88, %s102
      %p104 = scmp.eq.s32.totalorder %s22, 0
      %p105 = por %p103, %p104
      %s106 = ssub.s32 %s23, %s35
      %s107 = ssub.s32 %s24, %s31
      %s108 = sor.u32 %s106, %s107
      %p109 = scmp.eq.s32.totalorder %s108, 0
      %s111 = sadd.s32 %s110, 1
      %s112 = scalar_select %p109, %s110, %s111
      %p115 = pneg %p109
      %p116 = scmp.eq.s32.totalorder %s16, 3
      %p117 = por %p115, %p116
      %p118 = scmp.ne.s32.totalorder %s110, %s113
      %p119 = scmp.eq.s32.totalorder %s16, 0
      %p120 = por %p118, %p119
      %p121 = scmp.ne.s32.totalorder %s110, %s113
      %p122 = scmp.eq.s32.totalorder %s21, 3
      %p123 = por %p121, %p122
      %p124 = scmp.ne.s32.totalorder %s113, %s114
      %p125 = scmp.eq.s32.totalorder %s21, 0
      %p126 = por %p124, %p125
      %p127 = scmp.ne.s32.totalorder %s113, %s114
      %p128 = scmp.eq.s32.totalorder %s22, 3
      %p129 = por %p127, %p128
      %p131 = scmp.ne.s32.totalorder %s114, %s130
      %p132 = scmp.eq.s32.totalorder %s22, 0
      %p133 = por %p131, %p132
      %p134 = scmp.le.s32.totalorder 1, %s16
      %p135 = scmp.lt.s32.totalorder %s16, 5
      %p136 = pnand %p134, %p135
      %p137 = pneg %p136
      // Predicated region
      $region9: #{tpu_custom_call.1} parent=5 // pred_check
        _
      $region10: #{tpu_custom_call.1} parent=5 // pred_check_branch
        %139 = sbr.rel (%p136) target = $region12
      $region11: #{tpu_custom_call.1} parent=5 // pred_region
        %s140 = ssub.s32 %s16, 1
        // Predicated region
        $region13: #{tpu_custom_call.1} parent=11 // pred_check
          %p141 = pneg %p77
        $region14: #{tpu_custom_call.1} parent=11 // pred_check_branch
          %143 = sbr.rel (%p141) target = $region16
        $region15: #{tpu_custom_call.1} parent=11 // pred_region
          %145 = vsyncadd [#allocation7], 0
          %s146 = sshll.u32 %s1, 4
          %s147 = int_to_ptr.hbm [resolvable:$true] %s146
          %s148 = sshll.u32 [#allocation6], 4
          %s149 = int_to_ptr.vmem [resolvable:$true] %s148
          %154 = dma.hbm_to_vmem [thread:$0]  %s147, 256, %s149, [#allocation7], 64, 64, 4
        $region16: #{tpu_custom_call.1} parent=11 // pred_fallthru
          _
        // Predicated region
        $region17: #{tpu_custom_call.1} parent=11 // pred_check
          %p155 = pneg %p98
        $region18: #{tpu_custom_call.1} parent=11 // pred_check_branch
          %157 = sbr.rel (%p155) target = $region20
        $region19: #{tpu_custom_call.1} parent=11 // pred_region
          _
        $region20: #{tpu_custom_call.1} parent=11 // pred_fallthru
          _
      $region12: #{tpu_custom_call.1} parent=5 // pred_fallthru
        _
      %p158 = scmp.lt.s32.totalorder %s16, 4
      // Predicated region
      $region21: #{tpu_custom_call.1} parent=5 // pred_check
        %p159 = pneg %p158
      $region22: #{tpu_custom_call.1} parent=5 // pred_check_branch
        %161 = sbr.rel (%p159) target = $region24
      $region23: #{tpu_custom_call.1} parent=5 // pred_region
        // Predicated region
        $region25: #{tpu_custom_call.1} parent=23 // pred_check
          %p162 = pneg %p50
        $region26: #{tpu_custom_call.1} parent=23 // pred_check_branch
          %164 = sbr.rel (%p162) target = $region28
        $region27: #{tpu_custom_call.1} parent=23 // pred_region
          %s165 = sand.u32 %s40, 1
          %s166 = scalar_lea.sflag [#allocation4], %s165
          %s167 = sand.u32 %s40, 1
          %s168 = smul.addr %s167, 16
          %s169 = scalar_lea.vmem [#allocation3], %s168
          %s170 = smul.u32 2, %s23
          %172 = vsyncadd %s166, 0
          %s173 = smul.addr %s170, 2
          %s174 = sadd.s32 %s24, %s173
          %s175 = smul.addr %s174, 8
          %s176 = scalar_lea.hbm %s0, %s175
          %s177 = sshll.u32 %s176, 4
          %s178 = int_to_ptr.hbm [resolvable:$true] %s177
          %s179 = sshll.u32 %s169, 4
          %s180 = int_to_ptr.vmem [resolvable:$true] %s179
          %185 = dma.hbm_to_vmem [thread:$0]  %s178, 256, %s180, %s166, 256, 128, 8
        $region28: #{tpu_custom_call.1} parent=23 // pred_fallthru
          _
      $region24: #{tpu_custom_call.1} parent=5 // pred_fallthru
        _
      %p186 = scmp.le.s32.totalorder 1, %s16
      %p187 = scmp.lt.s32.totalorder %s16, 5
      %p188 = pnand %p186, %p187
      %p189 = pneg %p188
      // Predicated region
      $region29: #{tpu_custom_call.1} parent=5 // pred_check
        _
      $region30: #{tpu_custom_call.1} parent=5 // pred_check_branch
        %191 = sbr.rel (%p188) target = $region32
      $region31: #{tpu_custom_call.1} parent=5 // pred_region
        %s192 = ssub.s32 %s16, 1
        %s193 = sand.u32 %s43, 1
        %s194 = scalar_lea.sflag [#allocation4], %s193
        %s195 = sand.u32 %s43, 1
        %s196 = smul.addr %s195, 16
        %s197 = scalar_lea.vmem [#allocation3], %s196
        // Predicated region
        $region33: #{tpu_custom_call.1} parent=31 // pred_check
          %p198 = pneg %p56
        $region34: #{tpu_custom_call.1} parent=31 // pred_check_branch
          %200 = sbr.rel (%p198) target = $region36
        $region35: #{tpu_custom_call.1} parent=31 // pred_region
          %202 = dma.done %s194, 256
        $region36: #{tpu_custom_call.1} parent=31 // pred_fallthru
          _
        // Predicated region
        $region37: #{tpu_custom_call.1} parent=31 // pred_check
          %p203 = pneg %p77
        $region38: #{tpu_custom_call.1} parent=31 // pred_check_branch
          %205 = sbr.rel (%p203) target = $region40
        $region39: #{tpu_custom_call.1} parent=31 // pred_region
          %207 = dma.done [#allocation7], 256
        $region40: #{tpu_custom_call.1} parent=31 // pred_fallthru
          _
        %s208 = sand.u32 %s43, 1
        %s209 = scalar_lea.sflag [#allocation4], %s208
        %s210 = sand.u32 %s43, 1
        %s211 = smul.addr %s210, 16
        %s212 = scalar_lea.vmem [#allocation3], %s211
        %p213 = pneg %p56
        %p214 = pneg %p53
        %p215 = pneg %p77
        %p216 = pneg %p74
        %p217 = pneg %p98
        %p218 = pneg %p95
        %p219 = pneg %p126
        %p220 = pneg %p123
        %s221 = sand.u32 %s113, 1
        %s222 = scalar_lea.sflag [#allocation5], %s221
        %s223 = sand.u32 %s113, 1
        %s224 = smul.addr %s223, 16
        %s225 = scalar_lea.vmem [#allocation8], %s224
        %s226 = smul.u32 2, %s25
        %s227 = smul.u32 2, %s25
        %p229 = scmp.eq.s32.totalorder %s26, 0
        // Predicated region
        $region41: #{tpu_custom_call.1} parent=31 // pred_check
          %p230 = pneg %p229
        $region42: #{tpu_custom_call.1} parent=31 // pred_check_branch
          %232 = sbr.rel (%p230) target = $region44
        $region43: #{tpu_custom_call.1} parent=31 // pred_region
          %vm233 = vcmask 254976
          %234 = vst.msk [vmem:[#allocation2] sm:$0x3] %vm233, 0.0
        $region44: #{tpu_custom_call.1} parent=31 // pred_fallthru
          _
        %v235 = vld [vmem:[%s197] sm:$0xff]
        %v236 = vld [vmem:[%s197 + $0x8] sm:$0xff]
        %v237 = vld [vmem:[#allocation6] sm:$0xf]
        %v238 = vld [vmem:[#allocation6 + $0x4] sm:$0xf]
        %v239 = vld [vmem:[#allocation6 + $0x8] sm:$0xf]
        %v240 = vld [vmem:[#allocation6 + $0xc] sm:$0xf]
        %v241 = vld [vmem:[%s2] sm:$0x1]
        %v243 = vperm.slane %v241, 0
        %v244 = vld [vmem:[#allocation2] sm:$0x3]
        %v245 = vpack.c.bf16 %v244, %v244
        %v250 = vunpack.c.l.b16 %v237
        %v251 = vunpack.c.l.b16 %v238
        %v252 = vunpack.c.l.b16 %v239
        %v253 = vunpack.c.l.b16 %v240
        %v254 = vpack.c.b16 %v251, %v250
        %v255 = vpack.c.b16 %v253, %v252
        %vm258 = vcmask 261120
        %v260 = vsel %vm258, %v245, 0
        %262 = vmatpush.bf16.msra.mxu0 0
        %263 = vmatpush.bf16.msra.mxu0 0
        %264 = vmatpush.bf16.msra.mxu0 0
        %265 = vmatpush.bf16.msra.mxu0 0
        %266 = vmatpush.bf16.msra.mxu0 0
        %267 = vmatpush.bf16.msra.mxu0 0
        %268 = vmatpush.bf16.msra.mxu0 %v255
        %269 = vmatpush.bf16.msra.mxu0 %v254
        %270 = vmatmul.bf16.gmra.mxu0 %v260
        %v271 = vpop.f32.mrf.mxu0
        %v272 = vadd.f32 0.0, %v271
        %v273 = vpop.f32.mrf.mxu0
        %274 = vdwg.mxu0
        %v276 = vrot.slane %v272, 1
        %v279 = vadd.f32 %v235, %v272
        %v280 = vadd.f32 %v236, %v276
        %v281 = vxor.u32 %v279, 2147483648
        %v282 = vxor.u32 %v280, 2147483648
        %v283 = vmul.f32 %v281, 1.442695
        %v284 = vpow.pop %v283
        %v285 = vmul.f32 %v282, 1.442695
        %v286 = vpow.pop %v285
        %v287 = vadd.f32 %v284, 1.0
        %v288 = vadd.f32 %v286, 1.0
        %v289 = vrcp.pop %v287
        %v290 = vmul.f32 %v287, %v289
        %v291 = vsub.f32 1.0, %v290
        %v292 = vmul.f32 %v289, %v291
        %v293 = vadd.f32 %v289, %v292
        %vm294 = vweird.f32 %v287
        %vm295 = vweird.f32 %v289
        %vm296 = vmor %vm294, %vm295
        %v297 = vsel %vm296, %v289, %v293
        %v298 = vand.u32 2147483647, %v287
        %vm299 = vcmp.eq.f32.partialorder %v298, 8.507059e+37
        %v300 = vand.u32 %v287, 2147483648
        %v301 = vor.u32 1.1754944e-38, %v300
        %v302 = vsel %vm299, %v301, %v297
        %v303 = vmul.f32 1.0, %v302
        %v304 = vrcp.pop %v288
        %v305 = vmul.f32 %v288, %v304
        %v306 = vsub.f32 1.0, %v305
        %v307 = vmul.f32 %v304, %v306
        %v308 = vadd.f32 %v304, %v307
        %vm309 = vweird.f32 %v288
        %vm310 = vweird.f32 %v304
        %vm311 = vmor %vm309, %vm310
        %v312 = vsel %vm311, %v304, %v308
        %v313 = vand.u32 2147483647, %v288
        %vm314 = vcmp.eq.f32.partialorder %v313, 8.507059e+37
        %v315 = vand.u32 %v288, 2147483648
        %v316 = vor.u32 1.1754944e-38, %v315
        %v317 = vsel %vm314, %v316, %v312
        %v318 = vmul.f32 1.0, %v317
        %319 = vrot.lane.b32.xlu0 %v243, 64
        %v320 = vpop.permute.xlu0 %319
        %v322 = vadd.f32 %v272, %v320
        %v324 = vrot.slane %v322, 1
        %325 = vrot.lane.b32.xlu0 %v322, 64
        %v326 = vpop.permute.xlu0 %325
        %327 = vrot.lane.b32.xlu0 %v324, 64
        %v328 = vpop.permute.xlu0 %327
        %v331 = vmul.f32 %v303, %v326
        %v332 = vmul.f32 %v318, %v328
        %335 = vrot.lane.b32.xlu0 %v331, 64
        %v336 = vpop.permute.xlu0 %335
        %337 = vrot.lane.b32.xlu0 %v332, 64
        %v338 = vpop.permute.xlu0 %337
        %v341 = vadd.f32 %v235, %v336
        %v342 = vadd.f32 %v236, %v338
        %v343 = vtanh.pop %v341
        %v344 = vtanh.pop %v342
        %v345 = vsub.f32 1.0, %v303
        %v346 = vsub.f32 1.0, %v318
        %349 = vrot.lane.b32.xlu0 %v343, 96
        %v350 = vpop.permute.xlu0 %349
        %351 = vrot.lane.b32.xlu0 %v344, 96
        %v352 = vpop.permute.xlu0 %351
        %v355 = vmul.f32 %v345, %v350
        %v356 = vmul.f32 %v346, %v352
        %v358 = vrot.slane %v244, 1
        %359 = vrot.lane.b32.xlu0 %v244, 32
        %v360 = vpop.permute.xlu0 %359
        %361 = vrot.lane.b32.xlu0 %v358, 32
        %v362 = vpop.permute.xlu0 %361
        %v365 = vmul.f32 %v303, %v360
        %v366 = vmul.f32 %v318, %v362
        %v367 = vadd.f32 %v355, %v365
        %v368 = vadd.f32 %v356, %v366
        %371 = vrot.lane.b32.xlu0 %v367, 96
        %v372 = vpop.permute.xlu0 %371
        %373 = vrot.lane.b32.xlu0 %v368, 96
        %v374 = vpop.permute.xlu0 %373
        %vm377 = vcmask 253952
        %378 = vst.msk [vmem:[%s225] sm:$0x1] %vm377, %v372
        %379 = vst.msk [vmem:[%s225 + $0x8] sm:$0x1] %vm377, %v374
        %v380 = vpack.c.bf16 %v367, %v367
        %v381 = vpack.c.bf16 %v368, %v368
        %v384 = vunpack.c.l.b16 %v380
        %v385 = vunpack.c.l.b16 %v381
        %v386 = vrot.slane %v385, 7
        %vm387 = vcmask 1041409
        %v388 = vsel %vm387, %v386, %v384
        %v389 = vpack.c.b16 %v388, %v388
        %390 = vrot.lane.b32.xlu0 %v389, 96
        %v391 = vpop.permute.xlu0 %390
        %v393 = vsel %vm258, %v391, 0
        %395 = vmatpush.bf16.msra.mxu0 0
        %396 = vmatpush.bf16.msra.mxu0 0
        %397 = vmatpush.bf16.msra.mxu0 0
        %398 = vmatpush.bf16.msra.mxu0 0
        %399 = vmatpush.bf16.msra.mxu0 0
        %400 = vmatpush.bf16.msra.mxu0 0
        %401 = vmatpush.bf16.msra.mxu0 %v255
        %402 = vmatpush.bf16.msra.mxu0 %v254
        %403 = vmatmul.bf16.gmra.mxu0 %v393
        %v404 = vpop.f32.mrf.mxu0
        %v405 = vadd.f32 0.0, %v404
        %v406 = vpop.f32.mrf.mxu0
        %407 = vdwg.mxu0
        %v409 = vrot.slane %v405, 7
        %v412 = vadd.f32 %v235, %v409
        %v413 = vadd.f32 %v236, %v405
        %v414 = vxor.u32 %v412, 2147483648
        %v415 = vxor.u32 %v413, 2147483648
        %v416 = vmul.f32 %v414, 1.442695
        %v417 = vpow.pop %v416
        %v418 = vmul.f32 %v415, 1.442695
        %v419 = vpow.pop %v418
        %v420 = vadd.f32 %v417, 1.0
        %v421 = vadd.f32 %v419, 1.0
        %v422 = vrcp.pop %v420
        %v423 = vmul.f32 %v420, %v422
        %v424 = vsub.f32 1.0, %v423
        %v425 = vmul.f32 %v422, %v424
        %v426 = vadd.f32 %v422, %v425
        %vm427 = vweird.f32 %v420
        %vm428 = vweird.f32 %v422
        %vm429 = vmor %vm427, %vm428
        %v430 = vsel %vm429, %v422, %v426
        %v431 = vand.u32 2147483647, %v420
        %vm432 = vcmp.eq.f32.partialorder %v431, 8.507059e+37
        %v433 = vand.u32 %v420, 2147483648
        %v434 = vor.u32 1.1754944e-38, %v433
        %v435 = vsel %vm432, %v434, %v430
        %v436 = vmul.f32 1.0, %v435
        %v437 = vrcp.pop %v421
        %v438 = vmul.f32 %v421, %v437
        %v439 = vsub.f32 1.0, %v438
        %v440 = vmul.f32 %v437, %v439
        %v441 = vadd.f32 %v437, %v440
        %vm442 = vweird.f32 %v421
        %vm443 = vweird.f32 %v437
        %vm444 = vmor %vm442, %vm443
        %v445 = vsel %vm444, %v437, %v441
        %v446 = vand.u32 2147483647, %v421
        %vm447 = vcmp.eq.f32.partialorder %v446, 8.507059e+37
        %v448 = vand.u32 %v421, 2147483648
        %v449 = vor.u32 1.1754944e-38, %v448
        %v450 = vsel %vm447, %v449, %v445
        %v451 = vmul.f32 1.0, %v450
        %v452 = vadd.f32 %v405, %v320
        %v454 = vrot.slane %v452, 7
        %455 = vrot.lane.b32.xlu0 %v454, 64
        %v456 = vpop.permute.xlu0 %455
        %457 = vrot.lane.b32.xlu0 %v452, 64
        %v458 = vpop.permute.xlu0 %457
        %v461 = vmul.f32 %v436, %v456
        %v462 = vmul.f32 %v451, %v458
        %465 = vrot.lane.b32.xlu0 %v461, 64
        %v466 = vpop.permute.xlu0 %465
        %467 = vrot.lane.b32.xlu0 %v462, 64
        %v468 = vpop.permute.xlu0 %467
        %v471 = vadd.f32 %v235, %v466
        %v472 = vadd.f32 %v236, %v468
        %v473 = vtanh.pop %v471
        %v474 = vtanh.pop %v472
        %v475 = vsub.f32 1.0, %v436
        %v476 = vsub.f32 1.0, %v451
        %479 = vrot.lane.b32.xlu0 %v473, 96
        %v480 = vpop.permute.xlu0 %479
        %481 = vrot.lane.b32.xlu0 %v474, 96
        %v482 = vpop.permute.xlu0 %481
        %v485 = vmul.f32 %v475, %v480
        %v486 = vmul.f32 %v476, %v482
        %v487 = vrot.slane %v367, 7
        %v488 = vrot.slane %v368, 7
        %v491 = vmul.f32 %v436, %v487
        %v492 = vmul.f32 %v451, %v488
        %v493 = vadd.f32 %v485, %v491
        %v494 = vadd.f32 %v486, %v492
        %497 = vrot.lane.b32.xlu0 %v493, 96
        %v498 = vpop.permute.xlu0 %497
        %499 = vrot.lane.b32.xlu0 %v494, 96
        %v500 = vpop.permute.xlu0 %499
        %vm503 = vcmask 254977
        %504 = vst.msk [vmem:[%s225] sm:$0x2] %vm503, %v498
        %505 = vst.msk [vmem:[%s225 + $0x8] sm:$0x2] %vm503, %v500
        %v506 = vpack.c.bf16 %v493, %v493
        %v507 = vpack.c.bf16 %v494, %v494
        %v510 = vunpack.c.l.b16 %v506
        %v511 = vunpack.c.l.b16 %v507
        %v512 = vrot.slane %v510, 1
        %v513 = vsel %vm387, %v511, %v512
        %v514 = vpack.c.b16 %v513, %v513
        %515 = vrot.lane.b32.xlu0 %v514, 96
        %v516 = vpop.permute.xlu0 %515
        %v518 = vsel %vm258, %v516, 0
        %520 = vmatpush.bf16.msra.mxu0 0
        %521 = vmatpush.bf16.msra.mxu0 0
        %522 = vmatpush.bf16.msra.mxu0 0
        %523 = vmatpush.bf16.msra.mxu0 0
        %524 = vmatpush.bf16.msra.mxu0 0
        %525 = vmatpush.bf16.msra.mxu0 0
        %526 = vmatpush.bf16.msra.mxu0 %v255
        %527 = vmatpush.bf16.msra.mxu0 %v254
        %528 = vmatmul.bf16.gmra.mxu0 %v518
        %v529 = vpop.f32.mrf.mxu0
        %v530 = vadd.f32 0.0, %v529
        %v531 = vpop.f32.mrf.mxu0
        %532 = vdwg.mxu0
        %v534 = vrot.slane %v530, 6
        %v535 = vrot.slane %v530, 7
        %v538 = vadd.f32 %v235, %v534
        %v539 = vadd.f32 %v236, %v535
        %v540 = vxor.u32 %v538, 2147483648
        %v541 = vxor.u32 %v539, 2147483648
        %v542 = vmul.f32 %v540, 1.442695
        %v543 = vpow.pop %v542
        %v544 = vmul.f32 %v541, 1.442695
        %v545 = vpow.pop %v544
        %v546 = vadd.f32 %v543, 1.0
        %v547 = vadd.f32 %v545, 1.0
        %v548 = vrcp.pop %v546
        %v549 = vmul.f32 %v546, %v548
        %v550 = vsub.f32 1.0, %v549
        %v551 = vmul.f32 %v548, %v550
        %v552 = vadd.f32 %v548, %v551
        %vm553 = vweird.f32 %v546
        %vm554 = vweird.f32 %v548
        %vm555 = vmor %vm553, %vm554
        %v556 = vsel %vm555, %v548, %v552
        %v557 = vand.u32 2147483647, %v546
        %vm558 = vcmp.eq.f32.partialorder %v557, 8.507059e+37
        %v559 = vand.u32 %v546, 2147483648
        %v560 = vor.u32 1.1754944e-38, %v559
        %v561 = vsel %vm558, %v560, %v556
        %v562 = vmul.f32 1.0, %v561
        %v563 = vrcp.pop %v547
        %v564 = vmul.f32 %v547, %v563
        %v565 = vsub.f32 1.0, %v564
        %v566 = vmul.f32 %v563, %v565
        %v567 = vadd.f32 %v563, %v566
        %vm568 = vweird.f32 %v547
        %vm569 = vweird.f32 %v563
        %vm570 = vmor %vm568, %vm569
        %v571 = vsel %vm570, %v563, %v567
        %v572 = vand.u32 2147483647, %v547
        %vm573 = vcmp.eq.f32.partialorder %v572, 8.507059e+37
        %v574 = vand.u32 %v547, 2147483648
        %v575 = vor.u32 1.1754944e-38, %v574
        %v576 = vsel %vm573, %v575, %v571
        %v577 = vmul.f32 1.0, %v576
        %v578 = vadd.f32 %v530, %v320
        %v580 = vrot.slane %v578, 6
        %v581 = vrot.slane %v578, 7
        %582 = vrot.lane.b32.xlu0 %v580, 64
        %v583 = vpop.permute.xlu0 %582
        %584 = vrot.lane.b32.xlu0 %v581, 64
        %v585 = vpop.permute.xlu0 %584
        %v588 = vmul.f32 %v562, %v583
        %v589 = vmul.f32 %v577, %v585
        %592 = vrot.lane.b32.xlu0 %v588, 64
        %v593 = vpop.permute.xlu0 %592
        %594 = vrot.lane.b32.xlu0 %v589, 64
        %v595 = vpop.permute.xlu0 %594
        %v598 = vadd.f32 %v235, %v593
        %v599 = vadd.f32 %v236, %v595
        %v600 = vtanh.pop %v598
        %v601 = vtanh.pop %v599
        %v602 = vsub.f32 1.0, %v562
        %v603 = vsub.f32 1.0, %v577
        %606 = vrot.lane.b32.xlu0 %v600, 96
        %v607 = vpop.permute.xlu0 %606
        %608 = vrot.lane.b32.xlu0 %v601, 96
        %v609 = vpop.permute.xlu0 %608
        %v612 = vmul.f32 %v602, %v607
        %v613 = vmul.f32 %v603, %v609
        %v614 = vrot.slane %v493, 7
        %v615 = vrot.slane %v494, 7
        %v618 = vmul.f32 %v562, %v614
        %v619 = vmul.f32 %v577, %v615
        %v620 = vadd.f32 %v612, %v618
        %v621 = vadd.f32 %v613, %v619
        %624 = vrot.lane.b32.xlu0 %v620, 96
        %v625 = vpop.permute.xlu0 %624
        %626 = vrot.lane.b32.xlu0 %v621, 96
        %v627 = vpop.permute.xlu0 %626
        %vm630 = vcmask 256002
        %631 = vst.msk [vmem:[%s225] sm:$0x4] %vm630, %v625
        %632 = vst.msk [vmem:[%s225 + $0x8] sm:$0x4] %vm630, %v627
        %v633 = vpack.c.bf16 %v620, %v620
        %v634 = vpack.c.bf16 %v621, %v621
        %v637 = vunpack.c.l.b16 %v633
        %v638 = vunpack.c.l.b16 %v634
        %v639 = vrot.slane %v637, 2
        %v640 = vrot.slane %v638, 1
        %v641 = vsel %vm387, %v640, %v639
        %v642 = vpack.c.b16 %v641, %v641
        %643 = vrot.lane.b32.xlu0 %v642, 96
        %v644 = vpop.permute.xlu0 %643
        %v646 = vsel %vm258, %v644, 0
        %648 = vmatpush.bf16.msra.mxu0 0
        %649 = vmatpush.bf16.msra.mxu0 0
        %650 = vmatpush.bf16.msra.mxu0 0
        %651 = vmatpush.bf16.msra.mxu0 0
        %652 = vmatpush.bf16.msra.mxu0 0
        %653 = vmatpush.bf16.msra.mxu0 0
        %654 = vmatpush.bf16.msra.mxu0 %v255
        %655 = vmatpush.bf16.msra.mxu0 %v254
        %656 = vmatmul.bf16.gmra.mxu0 %v646
        %v657 = vpop.f32.mrf.mxu0
        %v658 = vadd.f32 0.0, %v657
        %v659 = vpop.f32.mrf.mxu0
        %660 = vdwg.mxu0
        %v662 = vrot.slane %v658, 5
        %v663 = vrot.slane %v658, 6
        %v666 = vadd.f32 %v235, %v662
        %v667 = vadd.f32 %v236, %v663
        %v668 = vxor.u32 %v666, 2147483648
        %v669 = vxor.u32 %v667, 2147483648
        %v670 = vmul.f32 %v668, 1.442695
        %v671 = vpow.pop %v670
        %v672 = vmul.f32 %v669, 1.442695
        %v673 = vpow.pop %v672
        %v674 = vadd.f32 %v671, 1.0
        %v675 = vadd.f32 %v673, 1.0
        %v676 = vrcp.pop %v674
        %v677 = vmul.f32 %v674, %v676
        %v678 = vsub.f32 1.0, %v677
        %v679 = vmul.f32 %v676, %v678
        %v680 = vadd.f32 %v676, %v679
        %vm681 = vweird.f32 %v674
        %vm682 = vweird.f32 %v676
        %vm683 = vmor %vm681, %vm682
        %v684 = vsel %vm683, %v676, %v680
        %v685 = vand.u32 2147483647, %v674
        %vm686 = vcmp.eq.f32.partialorder %v685, 8.507059e+37
        %v687 = vand.u32 %v674, 2147483648
        %v688 = vor.u32 1.1754944e-38, %v687
        %v689 = vsel %vm686, %v688, %v684
        %v690 = vmul.f32 1.0, %v689
        %v691 = vrcp.pop %v675
        %v692 = vmul.f32 %v675, %v691
        %v693 = vsub.f32 1.0, %v692
        %v694 = vmul.f32 %v691, %v693
        %v695 = vadd.f32 %v691, %v694
        %vm696 = vweird.f32 %v675
        %vm697 = vweird.f32 %v691
        %vm698 = vmor %vm696, %vm697
        %v699 = vsel %vm698, %v691, %v695
        %v700 = vand.u32 2147483647, %v675
        %vm701 = vcmp.eq.f32.partialorder %v700, 8.507059e+37
        %v702 = vand.u32 %v675, 2147483648
        %v703 = vor.u32 1.1754944e-38, %v702
        %v704 = vsel %vm701, %v703, %v699
        %v705 = vmul.f32 1.0, %v704
        %v706 = vadd.f32 %v658, %v320
        %v708 = vrot.slane %v706, 5
        %v709 = vrot.slane %v706, 6
        %710 = vrot.lane.b32.xlu0 %v708, 64
        %v711 = vpop.permute.xlu0 %710
        %712 = vrot.lane.b32.xlu0 %v709, 64
        %v713 = vpop.permute.xlu0 %712
        %v716 = vmul.f32 %v690, %v711
        %v717 = vmul.f32 %v705, %v713
        %720 = vrot.lane.b32.xlu0 %v716, 64
        %v721 = vpop.permute.xlu0 %720
        %722 = vrot.lane.b32.xlu0 %v717, 64
        %v723 = vpop.permute.xlu0 %722
        %v726 = vadd.f32 %v235, %v721
        %v727 = vadd.f32 %v236, %v723
        %v728 = vtanh.pop %v726
        %v729 = vtanh.pop %v727
        %v730 = vsub.f32 1.0, %v690
        %v731 = vsub.f32 1.0, %v705
        %734 = vrot.lane.b32.xlu0 %v728, 96
        %v735 = vpop.permute.xlu0 %734
        %736 = vrot.lane.b32.xlu0 %v729, 96
        %v737 = vpop.permute.xlu0 %736
        %v740 = vmul.f32 %v730, %v735
        %v741 = vmul.f32 %v731, %v737
        %v742 = vrot.slane %v620, 7
        %v743 = vrot.slane %v621, 7
        %v746 = vmul.f32 %v690, %v742
        %v747 = vmul.f32 %v705, %v743
        %v748 = vadd.f32 %v740, %v746
        %v749 = vadd.f32 %v741, %v747
        %752 = vrot.lane.b32.xlu0 %v748, 96
        %v753 = vpop.permute.xlu0 %752
        %754 = vrot.lane.b32.xlu0 %v749, 96
        %v755 = vpop.permute.xlu0 %754
        %vm758 = vcmask 257027
        %759 = vst.msk [vmem:[%s225] sm:$0x8] %vm758, %v753
        %760 = vst.msk [vmem:[%s225 + $0x8] sm:$0x8] %vm758, %v755
        %v761 = vpack.c.bf16 %v748, %v748
        %v762 = vpack.c.bf16 %v749, %v749
        %v765 = vunpack.c.l.b16 %v761
        %v766 = vunpack.c.l.b16 %v762
        %v767 = vrot.slane %v765, 3
        %v768 = vrot.slane %v766, 2
        %v769 = vsel %vm387, %v768, %v767
        %v770 = vpack.c.b16 %v769, %v769
        %771 = vrot.lane.b32.xlu0 %v770, 96
        %v772 = vpop.permute.xlu0 %771
        %v774 = vsel %vm258, %v772, 0
        %776 = vmatpush.bf16.msra.mxu0 0
        %777 = vmatpush.bf16.msra.mxu0 0
        %778 = vmatpush.bf16.msra.mxu0 0
        %779 = vmatpush.bf16.msra.mxu0 0
        %780 = vmatpush.bf16.msra.mxu0 0
        %781 = vmatpush.bf16.msra.mxu0 0
        %782 = vmatpush.bf16.msra.mxu0 %v255
        %783 = vmatpush.bf16.msra.mxu0 %v254
        %784 = vmatmul.bf16.gmra.mxu0 %v774
        %v785 = vpop.f32.mrf.mxu0
        %v786 = vadd.f32 0.0, %v785
        %v787 = vpop.f32.mrf.mxu0
        %788 = vdwg.mxu0
        %v790 = vrot.slane %v786, 4
        %v791 = vrot.slane %v786, 5
        %v794 = vadd.f32 %v235, %v790
        %v795 = vadd.f32 %v236, %v791
        %v796 = vxor.u32 %v794, 2147483648
        %v797 = vxor.u32 %v795, 2147483648
        %v798 = vmul.f32 %v796, 1.442695
        %v799 = vpow.pop %v798
        %v800 = vmul.f32 %v797, 1.442695
        %v801 = vpow.pop %v800
        %v802 = vadd.f32 %v799, 1.0
        %v803 = vadd.f32 %v801, 1.0
        %v804 = vrcp.pop %v802
        %v805 = vmul.f32 %v802, %v804
        %v806 = vsub.f32 1.0, %v805
        %v807 = vmul.f32 %v804, %v806
        %v808 = vadd.f32 %v804, %v807
        %vm809 = vweird.f32 %v802
        %vm810 = vweird.f32 %v804
        %vm811 = vmor %vm809, %vm810
        %v812 = vsel %vm811, %v804, %v808
        %v813 = vand.u32 2147483647, %v802
        %vm814 = vcmp.eq.f32.partialorder %v813, 8.507059e+37
        %v815 = vand.u32 %v802, 2147483648
        %v816 = vor.u32 1.1754944e-38, %v815
        %v817 = vsel %vm814, %v816, %v812
        %v818 = vmul.f32 1.0, %v817
        %v819 = vrcp.pop %v803
        %v820 = vmul.f32 %v803, %v819
        %v821 = vsub.f32 1.0, %v820
        %v822 = vmul.f32 %v819, %v821
        %v823 = vadd.f32 %v819, %v822
        %vm824 = vweird.f32 %v803
        %vm825 = vweird.f32 %v819
        %vm826 = vmor %vm824, %vm825
        %v827 = vsel %vm826, %v819, %v823
        %v828 = vand.u32 2147483647, %v803
        %vm829 = vcmp.eq.f32.partialorder %v828, 8.507059e+37
        %v830 = vand.u32 %v803, 2147483648
        %v831 = vor.u32 1.1754944e-38, %v830
        %v832 = vsel %vm829, %v831, %v827
        %v833 = vmul.f32 1.0, %v832
        %v834 = vadd.f32 %v786, %v320
        %v836 = vrot.slane %v834, 4
        %v837 = vrot.slane %v834, 5
        %838 = vrot.lane.b32.xlu0 %v836, 64
        %v839 = vpop.permute.xlu0 %838
        %840 = vrot.lane.b32.xlu0 %v837, 64
        %v841 = vpop.permute.xlu0 %840
        %v844 = vmul.f32 %v818, %v839
        %v845 = vmul.f32 %v833, %v841
        %848 = vrot.lane.b32.xlu0 %v844, 64
        %v849 = vpop.permute.xlu0 %848
        %850 = vrot.lane.b32.xlu0 %v845, 64
        %v851 = vpop.permute.xlu0 %850
        %v854 = vadd.f32 %v235, %v849
        %v855 = vadd.f32 %v236, %v851
        %v856 = vtanh.pop %v854
        %v857 = vtanh.pop %v855
        %v858 = vsub.f32 1.0, %v818
        %v859 = vsub.f32 1.0, %v833
        %862 = vrot.lane.b32.xlu0 %v856, 96
        %v863 = vpop.permute.xlu0 %862
        %864 = vrot.lane.b32.xlu0 %v857, 96
        %v865 = vpop.permute.xlu0 %864
        %v868 = vmul.f32 %v858, %v863
        %v869 = vmul.f32 %v859, %v865
        %v870 = vrot.slane %v748, 7
        %v871 = vrot.slane %v749, 7
        %v874 = vmul.f32 %v818, %v870
        %v875 = vmul.f32 %v833, %v871
        %v876 = vadd.f32 %v868, %v874
        %v877 = vadd.f32 %v869, %v875
        %880 = vrot.lane.b32.xlu0 %v876, 96
        %v881 = vpop.permute.xlu0 %880
        %882 = vrot.lane.b32.xlu0 %v877, 96
        %v883 = vpop.permute.xlu0 %882
        %vm886 = vcmask 258052
        %887 = vst.msk [vmem:[%s225] sm:$0x10] %vm886, %v881
        %888 = vst.msk [vmem:[%s225 + $0x8] sm:$0x10] %vm886, %v883
        %v889 = vpack.c.bf16 %v876, %v876
        %v890 = vpack.c.bf16 %v877, %v877
        %v893 = vunpack.c.l.b16 %v889
        %v894 = vunpack.c.l.b16 %v890
        %v895 = vrot.slane %v893, 4
        %v896 = vrot.slane %v894, 3
        %v897 = vsel %vm387, %v896, %v895
        %v898 = vpack.c.b16 %v897, %v897
        %899 = vrot.lane.b32.xlu0 %v898, 96
        %v900 = vpop.permute.xlu0 %899
        %v902 = vsel %vm258, %v900, 0
        %904 = vmatpush.bf16.msra.mxu0 0
        %905 = vmatpush.bf16.msra.mxu0 0
        %906 = vmatpush.bf16.msra.mxu0 0
        %907 = vmatpush.bf16.msra.mxu0 0
        %908 = vmatpush.bf16.msra.mxu0 0
        %909 = vmatpush.bf16.msra.mxu0 0
        %910 = vmatpush.bf16.msra.mxu0 %v255
        %911 = vmatpush.bf16.msra.mxu0 %v254
        %912 = vmatmul.bf16.gmra.mxu0 %v902
        %v913 = vpop.f32.mrf.mxu0
        %v914 = vadd.f32 0.0, %v913
        %v915 = vpop.f32.mrf.mxu0
        %916 = vdwg.mxu0
        %v918 = vrot.slane %v914, 3
        %v919 = vrot.slane %v914, 4
        %v922 = vadd.f32 %v235, %v918
        %v923 = vadd.f32 %v236, %v919
        %v924 = vxor.u32 %v922, 2147483648
        %v925 = vxor.u32 %v923, 2147483648
        %v926 = vmul.f32 %v924, 1.442695
        %v927 = vpow.pop %v926
        %v928 = vmul.f32 %v925, 1.442695
        %v929 = vpow.pop %v928
        %v930 = vadd.f32 %v927, 1.0
        %v931 = vadd.f32 %v929, 1.0
        %v932 = vrcp.pop %v930
        %v933 = vmul.f32 %v930, %v932
        %v934 = vsub.f32 1.0, %v933
        %v935 = vmul.f32 %v932, %v934
        %v936 = vadd.f32 %v932, %v935
        %vm937 = vweird.f32 %v930
        %vm938 = vweird.f32 %v932
        %vm939 = vmor %vm937, %vm938
        %v940 = vsel %vm939, %v932, %v936
        %v941 = vand.u32 2147483647, %v930
        %vm942 = vcmp.eq.f32.partialorder %v941, 8.507059e+37
        %v943 = vand.u32 %v930, 2147483648
        %v944 = vor.u32 1.1754944e-38, %v943
        %v945 = vsel %vm942, %v944, %v940
        %v946 = vmul.f32 1.0, %v945
        %v947 = vrcp.pop %v931
        %v948 = vmul.f32 %v931, %v947
        %v949 = vsub.f32 1.0, %v948
        %v950 = vmul.f32 %v947, %v949
        %v951 = vadd.f32 %v947, %v950
        %vm952 = vweird.f32 %v931
        %vm953 = vweird.f32 %v947
        %vm954 = vmor %vm952, %vm953
        %v955 = vsel %vm954, %v947, %v951
        %v956 = vand.u32 2147483647, %v931
        %vm957 = vcmp.eq.f32.partialorder %v956, 8.507059e+37
        %v958 = vand.u32 %v931, 2147483648
        %v959 = vor.u32 1.1754944e-38, %v958
        %v960 = vsel %vm957, %v959, %v955
        %v961 = vmul.f32 1.0, %v960
        %v962 = vadd.f32 %v914, %v320
        %v964 = vrot.slane %v962, 3
        %v965 = vrot.slane %v962, 4
        %966 = vrot.lane.b32.xlu0 %v964, 64
        %v967 = vpop.permute.xlu0 %966
        %968 = vrot.lane.b32.xlu0 %v965, 64
        %v969 = vpop.permute.xlu0 %968
        %v972 = vmul.f32 %v946, %v967
        %v973 = vmul.f32 %v961, %v969
        %976 = vrot.lane.b32.xlu0 %v972, 64
        %v977 = vpop.permute.xlu0 %976
        %978 = vrot.lane.b32.xlu0 %v973, 64
        %v979 = vpop.permute.xlu0 %978
        %v982 = vadd.f32 %v235, %v977
        %v983 = vadd.f32 %v236, %v979
        %v984 = vtanh.pop %v982
        %v985 = vtanh.pop %v983
        %v986 = vsub.f32 1.0, %v946
        %v987 = vsub.f32 1.0, %v961
        %990 = vrot.lane.b32.xlu0 %v984, 96
        %v991 = vpop.permute.xlu0 %990
        %992 = vrot.lane.b32.xlu0 %v985, 96
        %v993 = vpop.permute.xlu0 %992
        %v996 = vmul.f32 %v986, %v991
        %v997 = vmul.f32 %v987, %v993
        %v998 = vrot.slane %v876, 7
        %v999 = vrot.slane %v877, 7
        %v1002 = vmul.f32 %v946, %v998
        %v1003 = vmul.f32 %v961, %v999
        %v1004 = vadd.f32 %v996, %v1002
        %v1005 = vadd.f32 %v997, %v1003
        %1008 = vrot.lane.b32.xlu0 %v1004, 96
        %v1009 = vpop.permute.xlu0 %1008
        %1010 = vrot.lane.b32.xlu0 %v1005, 96
        %v1011 = vpop.permute.xlu0 %1010
        %vm1014 = vcmask 259077
        %1015 = vst.msk [vmem:[%s225] sm:$0x20] %vm1014, %v1009
        %1016 = vst.msk [vmem:[%s225 + $0x8] sm:$0x20] %vm1014, %v1011
        %v1017 = vpack.c.bf16 %v1004, %v1004
        %v1018 = vpack.c.bf16 %v1005, %v1005
        %v1021 = vunpack.c.l.b16 %v1017
        %v1022 = vunpack.c.l.b16 %v1018
        %v1023 = vrot.slane %v1021, 5
        %v1024 = vrot.slane %v1022, 4
        %v1025 = vsel %vm387, %v1024, %v1023
        %v1026 = vpack.c.b16 %v1025, %v1025
        %1027 = vrot.lane.b32.xlu0 %v1026, 96
        %v1028 = vpop.permute.xlu0 %1027
        %v1030 = vsel %vm258, %v1028, 0
        %1032 = vmatpush.bf16.msra.mxu0 0
        %1033 = vmatpush.bf16.msra.mxu0 0
        %1034 = vmatpush.bf16.msra.mxu0 0
        %1035 = vmatpush.bf16.msra.mxu0 0
        %1036 = vmatpush.bf16.msra.mxu0 0
        %1037 = vmatpush.bf16.msra.mxu0 0
        %1038 = vmatpush.bf16.msra.mxu0 %v255
        %1039 = vmatpush.bf16.msra.mxu0 %v254
        %1040 = vmatmul.bf16.gmra.mxu0 %v1030
        %v1041 = vpop.f32.mrf.mxu0
        %v1042 = vadd.f32 0.0, %v1041
        %v1043 = vpop.f32.mrf.mxu0
        %1044 = vdwg.mxu0
        %v1046 = vrot.slane %v1042, 2
        %v1047 = vrot.slane %v1042, 3
        %v1050 = vadd.f32 %v235, %v1046
        %v1051 = vadd.f32 %v236, %v1047
        %v1052 = vxor.u32 %v1050, 2147483648
        %v1053 = vxor.u32 %v1051, 2147483648
        %v1054 = vmul.f32 %v1052, 1.442695
        %v1055 = vpow.pop %v1054
        %v1056 = vmul.f32 %v1053, 1.442695
        %v1057 = vpow.pop %v1056
        %v1058 = vadd.f32 %v1055, 1.0
        %v1059 = vadd.f32 %v1057, 1.0
        %v1060 = vrcp.pop %v1058
        %v1061 = vmul.f32 %v1058, %v1060
        %v1062 = vsub.f32 1.0, %v1061
        %v1063 = vmul.f32 %v1060, %v1062
        %v1064 = vadd.f32 %v1060, %v1063
        %vm1065 = vweird.f32 %v1058
        %vm1066 = vweird.f32 %v1060
        %vm1067 = vmor %vm1065, %vm1066
        %v1068 = vsel %vm1067, %v1060, %v1064
        %v1069 = vand.u32 2147483647, %v1058
        %vm1070 = vcmp.eq.f32.partialorder %v1069, 8.507059e+37
        %v1071 = vand.u32 %v1058, 2147483648
        %v1072 = vor.u32 1.1754944e-38, %v1071
        %v1073 = vsel %vm1070, %v1072, %v1068
        %v1074 = vmul.f32 1.0, %v1073
        %v1075 = vrcp.pop %v1059
        %v1076 = vmul.f32 %v1059, %v1075
        %v1077 = vsub.f32 1.0, %v1076
        %v1078 = vmul.f32 %v1075, %v1077
        %v1079 = vadd.f32 %v1075, %v1078
        %vm1080 = vweird.f32 %v1059
        %vm1081 = vweird.f32 %v1075
        %vm1082 = vmor %vm1080, %vm1081
        %v1083 = vsel %vm1082, %v1075, %v1079
        %v1084 = vand.u32 2147483647, %v1059
        %vm1085 = vcmp.eq.f32.partialorder %v1084, 8.507059e+37
        %v1086 = vand.u32 %v1059, 2147483648
        %v1087 = vor.u32 1.1754944e-38, %v1086
        %v1088 = vsel %vm1085, %v1087, %v1083
        %v1089 = vmul.f32 1.0, %v1088
        %v1090 = vadd.f32 %v1042, %v320
        %v1092 = vrot.slane %v1090, 2
        %v1093 = vrot.slane %v1090, 3
        %1094 = vrot.lane.b32.xlu0 %v1092, 64
        %v1095 = vpop.permute.xlu0 %1094
        %1096 = vrot.lane.b32.xlu0 %v1093, 64
        %v1097 = vpop.permute.xlu0 %1096
        %v1100 = vmul.f32 %v1074, %v1095
        %v1101 = vmul.f32 %v1089, %v1097
        %1104 = vrot.lane.b32.xlu0 %v1100, 64
        %v1105 = vpop.permute.xlu0 %1104
        %1106 = vrot.lane.b32.xlu0 %v1101, 64
        %v1107 = vpop.permute.xlu0 %1106
        %v1110 = vadd.f32 %v235, %v1105
        %v1111 = vadd.f32 %v236, %v1107
        %v1112 = vtanh.pop %v1110
        %v1113 = vtanh.pop %v1111
        %v1114 = vsub.f32 1.0, %v1074
        %v1115 = vsub.f32 1.0, %v1089
        %1118 = vrot.lane.b32.xlu0 %v1112, 96
        %v1119 = vpop.permute.xlu0 %1118
        %1120 = vrot.lane.b32.xlu0 %v1113, 96
        %v1121 = vpop.permute.xlu0 %1120
        %v1124 = vmul.f32 %v1114, %v1119
        %v1125 = vmul.f32 %v1115, %v1121
        %v1126 = vrot.slane %v1004, 7
        %v1127 = vrot.slane %v1005, 7
        %v1130 = vmul.f32 %v1074, %v1126
        %v1131 = vmul.f32 %v1089, %v1127
        %v1132 = vadd.f32 %v1124, %v1130
        %v1133 = vadd.f32 %v1125, %v1131
        %1136 = vrot.lane.b32.xlu0 %v1132, 96
        %v1137 = vpop.permute.xlu0 %1136
        %1138 = vrot.lane.b32.xlu0 %v1133, 96
        %v1139 = vpop.permute.xlu0 %1138
        %vm1142 = vcmask 260102
        %1143 = vst.msk [vmem:[%s225] sm:$0x40] %vm1142, %v1137
        %1144 = vst.msk [vmem:[%s225 + $0x8] sm:$0x40] %vm1142, %v1139
        %v1145 = vpack.c.bf16 %v1132, %v1132
        %v1146 = vpack.c.bf16 %v1133, %v1133
        %v1149 = vunpack.c.l.b16 %v1145
        %v1150 = vunpack.c.l.b16 %v1146
        %v1151 = vrot.slane %v1149, 6
        %v1152 = vrot.slane %v1150, 5
        %v1153 = vsel %vm387, %v1152, %v1151
        %v1154 = vpack.c.b16 %v1153, %v1153
        %1155 = vrot.lane.b32.xlu0 %v1154, 96
        %v1156 = vpop.permute.xlu0 %1155
        %v1158 = vsel %vm258, %v1156, 0
        %1160 = vmatpush.bf16.msra.mxu0 0
        %1161 = vmatpush.bf16.msra.mxu0 0
        %1162 = vmatpush.bf16.msra.mxu0 0
        %1163 = vmatpush.bf16.msra.mxu0 0
        %1164 = vmatpush.bf16.msra.mxu0 0
        %1165 = vmatpush.bf16.msra.mxu0 0
        %1166 = vmatpush.bf16.msra.mxu0 %v255
        %1167 = vmatpush.bf16.msra.mxu0 %v254
        %1168 = vmatmul.bf16.gmra.mxu0 %v1158
        %v1169 = vpop.f32.mrf.mxu0
        %v1170 = vadd.f32 0.0, %v1169
        %v1171 = vpop.f32.mrf.mxu0
        %1172 = vdwg.mxu0
        %v1174 = vrot.slane %v1170, 1
        %v1175 = vrot.slane %v1170, 2
        %v1178 = vadd.f32 %v235, %v1174
        %v1179 = vadd.f32 %v236, %v1175
        %v1180 = vxor.u32 %v1178, 2147483648
        %v1181 = vxor.u32 %v1179, 2147483648
        %v1182 = vmul.f32 %v1180, 1.442695
        %v1183 = vpow.pop %v1182
        %v1184 = vmul.f32 %v1181, 1.442695
        %v1185 = vpow.pop %v1184
        %v1186 = vadd.f32 %v1183, 1.0
        %v1187 = vadd.f32 %v1185, 1.0
        %v1188 = vrcp.pop %v1186
        %v1189 = vmul.f32 %v1186, %v1188
        %v1190 = vsub.f32 1.0, %v1189
        %v1191 = vmul.f32 %v1188, %v1190
        %v1192 = vadd.f32 %v1188, %v1191
        %vm1193 = vweird.f32 %v1186
        %vm1194 = vweird.f32 %v1188
        %vm1195 = vmor %vm1193, %vm1194
        %v1196 = vsel %vm1195, %v1188, %v1192
        %v1197 = vand.u32 2147483647, %v1186
        %vm1198 = vcmp.eq.f32.partialorder %v1197, 8.507059e+37
        %v1199 = vand.u32 %v1186, 2147483648
        %v1200 = vor.u32 1.1754944e-38, %v1199
        %v1201 = vsel %vm1198, %v1200, %v1196
        %v1202 = vmul.f32 1.0, %v1201
        %v1203 = vrcp.pop %v1187
        %v1204 = vmul.f32 %v1187, %v1203
        %v1205 = vsub.f32 1.0, %v1204
        %v1206 = vmul.f32 %v1203, %v1205
        %v1207 = vadd.f32 %v1203, %v1206
        %vm1208 = vweird.f32 %v1187
        %vm1209 = vweird.f32 %v1203
        %vm1210 = vmor %vm1208, %vm1209
        %v1211 = vsel %vm1210, %v1203, %v1207
        %v1212 = vand.u32 2147483647, %v1187
        %vm1213 = vcmp.eq.f32.partialorder %v1212, 8.507059e+37
        %v1214 = vand.u32 %v1187, 2147483648
        %v1215 = vor.u32 1.1754944e-38, %v1214
        %v1216 = vsel %vm1213, %v1215, %v1211
        %v1217 = vmul.f32 1.0, %v1216
        %v1218 = vadd.f32 %v1170, %v320
        %v1220 = vrot.slane %v1218, 1
        %v1221 = vrot.slane %v1218, 2
        %1222 = vrot.lane.b32.xlu0 %v1220, 64
        %v1223 = vpop.permute.xlu0 %1222
        %1224 = vrot.lane.b32.xlu0 %v1221, 64
        %v1225 = vpop.permute.xlu0 %1224
        %v1228 = vmul.f32 %v1202, %v1223
        %v1229 = vmul.f32 %v1217, %v1225
        %1232 = vrot.lane.b32.xlu0 %v1228, 64
        %v1233 = vpop.permute.xlu0 %1232
        %1234 = vrot.lane.b32.xlu0 %v1229, 64
        %v1235 = vpop.permute.xlu0 %1234
        %v1238 = vadd.f32 %v235, %v1233
        %v1239 = vadd.f32 %v236, %v1235
        %v1240 = vtanh.pop %v1238
        %v1241 = vtanh.pop %v1239
        %v1242 = vsub.f32 1.0, %v1202
        %v1243 = vsub.f32 1.0, %v1217
        %1246 = vrot.lane.b32.xlu0 %v1240, 96
        %v1247 = vpop.permute.xlu0 %1246
        %1248 = vrot.lane.b32.xlu0 %v1241, 96
        %v1249 = vpop.permute.xlu0 %1248
        %v1252 = vmul.f32 %v1242, %v1247
        %v1253 = vmul.f32 %v1243, %v1249
        %v1254 = vrot.slane %v1132, 7
        %v1255 = vrot.slane %v1133, 7
        %v1258 = vmul.f32 %v1202, %v1254
        %v1259 = vmul.f32 %v1217, %v1255
        %v1260 = vadd.f32 %v1252, %v1258
        %v1261 = vadd.f32 %v1253, %v1259
        %1264 = vrot.lane.b32.xlu0 %v1260, 96
        %v1265 = vpop.permute.xlu0 %1264
        %1266 = vrot.lane.b32.xlu0 %v1261, 96
        %v1267 = vpop.permute.xlu0 %1266
        %vm1270 = vcmask 261127
        %1271 = vst.msk [vmem:[%s225] sm:$0x80] %vm1270, %v1265
        %1272 = vst.msk [vmem:[%s225 + $0x8] sm:$0x80] %vm1270, %v1267
        %v1273 = vrot.slane %v1261, 7
        %1274 = vrot.lane.b32.xlu0 %v1273, 96
        %v1275 = vpop.permute.xlu0 %1274
        %1277 = vst.msk [vmem:[#allocation2 - $0x7] sm:$0x80] %vm1270, %v1265
        %1278 = vst.msk [vmem:[#allocation2 + $0x1] sm:$0x1] %vm377, %v1275
        %s1279 = sand.u32 %s113, 1
        %s1280 = scalar_lea.sflag [#allocation5], %s1279
        %s1281 = sand.u32 %s113, 1
        %s1282 = smul.addr %s1281, 16
        %s1283 = scalar_lea.vmem [#allocation8], %s1282
        // Predicated region
        $region45: #{tpu_custom_call.1} parent=31 // pred_check
          %p1284 = pneg %p123
        $region46: #{tpu_custom_call.1} parent=31 // pred_check_branch
          %1286 = sbr.rel (%p1284) target = $region48
        $region47: #{tpu_custom_call.1} parent=31 // pred_region
          %s1287 = smul.u32 2, %s25
          %1289 = vsyncadd %s1280, 0
          %s1290 = smul.addr %s1287, 2
          %s1291 = sadd.s32 %s26, %s1290
          %s1292 = smul.addr %s1291, 8
          %s1293 = scalar_lea.hbm %s3, %s1292
          %s1294 = sshll.u32 %s1283, 4
          %s1295 = int_to_ptr.vmem [resolvable:$true] %s1294
          %s1296 = sshll.u32 %s1293, 4
          %s1297 = int_to_ptr.hbm [resolvable:$true] %s1296
          %1302 = dma.vmem_to_hbm [thread:$0]  %s1295, 256, %s1297, %s1280, 128, 256, 8
        $region48: #{tpu_custom_call.1} parent=31 // pred_fallthru
          _
      $region32: #{tpu_custom_call.1} parent=5 // pred_fallthru
        _
      %p1303 = scmp.le.s32.totalorder 2, %s16
      // Predicated region
      $region49: #{tpu_custom_call.1} parent=5 // pred_check
        %p1304 = pneg %p1303
      $region50: #{tpu_custom_call.1} parent=5 // pred_check_branch
        %1306 = sbr.rel (%p1304) target = $region52
      $region51: #{tpu_custom_call.1} parent=5 // pred_region
        %s1307 = ssub.s32 %s16, 2
        // Predicated region
        $region53: #{tpu_custom_call.1} parent=51 // pred_check
          %p1308 = pneg %p129
        $region54: #{tpu_custom_call.1} parent=51 // pred_check_branch
          %1310 = sbr.rel (%p1308) target = $region56
        $region55: #{tpu_custom_call.1} parent=51 // pred_region
          %s1311 = sand.u32 %s114, 1
          %s1312 = scalar_lea.sflag [#allocation5], %s1311
          %s1313 = sand.u32 %s114, 1
          %s1314 = smul.addr %s1313, 16
          %s1315 = scalar_lea.vmem [#allocation8], %s1314
          %1317 = dma.done %s1312, 256
        $region56: #{tpu_custom_call.1} parent=51 // pred_fallthru
          _
      $region52: #{tpu_custom_call.1} parent=5 // pred_fallthru
        _
    $region6: #{tpu_custom_call.1} parent=1 // loop_footer
      %s20 = sadd.s32 1, %s16
    $region7: #{tpu_custom_call.1} parent=1 // loop_footer_branch
      %15 = sbr.rel target = $region3
    $region8: #{tpu_custom_call.1} parent=1 // loop_exit
      _
    %1318 = vsyncpa [#allocation4], 1
    %s1319 = scalar_lea.sflag [#allocation4], 1
    %1320 = vsyncpa %s1319, 1
    %1321 = vsyncpa [#allocation7], 1
    %1322 = vsyncpa [#allocation5], 1
    %s1323 = scalar_lea.sflag [#allocation5], 1
    %1324 = vsyncpa %s1323, 1

</llo_original>
